<compile_context>
chip_gen: v5e
topology: v5e:2x2
jax: 0.10.0
libtpu: 0.0.40
codegen_flags: <defaults>
</compile_context>

<pallas_src>
import functools

import jax
import jax.numpy as jnp
from jax.experimental import pallas as pl
from jax.experimental.pallas import tpu as pltpu


def _round_up(x, m):
    return ((x + m - 1) // m) * m


def _product_rbf_body(x1_ref, x2t_ref, sw_row_ref, sw_col_ref, o_ref,
                      *, num_features):
    """Fused ProductKernel-of-RBFs tile:
         out[i, j] = exp(-0.5 * sum_d w2[d] * (x1[i,d] - x2[j,d])^2)
    where sqrt(w2) is applied to both operands (sw_row / sw_col)."""
    x1s = x1_ref[...] * sw_row_ref[...]     # (tn, D) * (1, D)  -> scaled rows
    x2s = x2t_ref[...] * sw_col_ref[...]    # (D, tm) * (D, 1)  -> scaled cols

    acc = None
    for d in range(num_features):           # D is small; fully unrolled VPU work
        diff = x1s[:, d:d + 1] - x2s[d:d + 1, :]      # (tn, 1)-(1, tm) -> (tn, tm)
        sq = diff * diff
        acc = sq if acc is None else acc + sq

    # Single transcendental per output element (EUP) — the K component kernels
    # are fused into one exp.
    o_ref[...] = jnp.exp(-0.5 * acc).astype(o_ref.dtype)


def product_kernel(x1, x2, inv_ls, *, tn=256, tm=512):
    """ProductKernel of RBF components.

    x1: (N, D) float32, x2: (M, D) float32,
    inv_ls: (K, D) masked inverse lengthscales (zeros outside active dims).
    Returns the (N, M) float32 covariance matrix.
    """
    N, D = x1.shape
    M, D2 = x2.shape
    assert D == D2, "x1 and x2 must have the same number of feature dims"

    # Fuse the K RBF components: combined per-dim weights.
    w2 = jnp.sum(inv_ls.astype(jnp.float32) ** 2, axis=0)        # (D,)
    sw = jnp.sqrt(w2)
    sw_row = sw.reshape(1, D)                                    # scales x1 rows
    sw_col = sw.reshape(D, 1)                                    # scales x2^T cols

    # Tile sizes: keep sublane/lane alignment, clamp to problem size.
    tn = min(tn, _round_up(N, 8))
    tm = min(tm, _round_up(M, 128))
    assert tn % 8 == 0 and tm % 128 == 0

    n_pad = _round_up(N, tn)
    m_pad = _round_up(M, tm)

    x1p = x1 if n_pad == N else jnp.pad(x1, ((0, n_pad - N), (0, 0)))
    x2t = x2.T                                                   # (D, M)
    x2tp = x2t if m_pad == M else jnp.pad(x2t, ((0, 0), (0, m_pad - M)))

    grid = (n_pad // tn, m_pad // tm)   # M axis innermost -> x1 tile not re-DMA'd

    kernel = functools.partial(_product_rbf_body, num_features=D)
    out = pl.pallas_call(
        kernel,
        out_shape=jax.ShapeDtypeStruct((n_pad, m_pad), jnp.float32),
        grid_spec=pltpu.PrefetchScalarGridSpec(
            num_scalar_prefetch=0,
            grid=grid,
            in_specs=[
                pl.BlockSpec((tn, D), lambda i, j: (i, 0)),   # x1 row tile
                pl.BlockSpec((D, tm), lambda i, j: (0, j)),   # x2^T col tile
                pl.BlockSpec((1, D), lambda i, j: (0, 0)),    # sqrt-weights (row)
                pl.BlockSpec((D, 1), lambda i, j: (0, 0)),    # sqrt-weights (col)
            ],
            out_specs=pl.BlockSpec((tn, tm), lambda i, j: (i, j)),
        ),
        compiler_params=pltpu.CompilerParams(
            dimension_semantics=("parallel", "parallel"),
            vmem_limit_bytes=32 * 1024 * 1024,
        ),
    )(x1p, x2tp, sw_row, sw_col)

    if n_pad != N or m_pad != M:
        out = out[:N, :M]
    return out


if __name__ == "__main__":
    key = jax.random.PRNGKey(0)
    k1, k2 = jax.random.split(key)

    N, M, D = 512, 512, 2
    x1 = jax.random.normal(k1, (N, D), dtype=jnp.float32)
    x2 = jax.random.normal(k2, (M, D), dtype=jnp.float32)

    # ProductKernel(RBFKernel(active_dims=[0]), RBFKernel(active_dims=[1]))
    # gpytorch: log_lengthscale param, exp transform, clamp to [eps, 1e5].
    log_lengthscales = jnp.array([0.3, -0.2], dtype=jnp.float32)
    active_dims = (0, 1)
    eps = 1e-6
    lengthscales = jnp.clip(jnp.exp(log_lengthscales), eps, 1e5)

    K = len(active_dims)
    inv_ls = jnp.zeros((K, D), dtype=jnp.float32)
    for k, a in enumerate(active_dims):
        inv_ls = inv_ls.at[k, a].set(1.0 / lengthscales[k])

    out = jax.block_until_ready(product_kernel(x1, x2, inv_ls))

    # Pure-JAX reference: elementwise product of component RBF kernel matrices.
    ref = jnp.ones((N, M), dtype=jnp.float32)
    for k in range(K):
        d1 = x1 * inv_ls[k][None, :]
        d2 = x2 * inv_ls[k][None, :]
        dist2 = jnp.sum((d1[:, None, :] - d2[None, :, :]) ** 2, axis=-1)
        ref = ref * jnp.exp(-0.5 * dist2)

    assert out.shape == (N, M), out.shape
    assert out.dtype == jnp.float32
    assert jnp.allclose(out, ref, atol=1e-4, rtol=1e-4), float(
        jnp.max(jnp.abs(out - ref)))
    print("KERNEL_OK")
</pallas_src>

<mosaic_0001>
module attributes {stable_mosaic.version = 11 : i64} {
  func.func @_product_rbf_body(%arg0: i32, %arg1: i32, %arg2: memref<256x2xf32, #tpu.memory_space<vmem>>, %arg3: memref<2x512xf32, #tpu.memory_space<vmem>>, %arg4: memref<1x2xf32, #tpu.memory_space<vmem>>, %arg5: memref<2x1xf32, #tpu.memory_space<vmem>>, %arg6: memref<256x512xf32, #tpu.memory_space<vmem>>) attributes {dimension_semantics = [#tpu.dimension_semantics<parallel>, #tpu.dimension_semantics<parallel>], iteration_bounds = array<i64: 2, 1>, scalar_prefetch = 0 : i64, scratch_operands = 0 : i64, tpu.core_type = #tpu.core_type<tc>, window_params = [{transform_indices = @transform_0, window_bounds = array<i64: 256, 2>}, {transform_indices = @transform_1, window_bounds = array<i64: 2, 512>}, {pipeline_mode = #tpu.pipeline_mode<synchronous>, transform_indices = @transform_2, window_bounds = array<i64: 1, 2>}, {pipeline_mode = #tpu.pipeline_mode<synchronous>, transform_indices = @transform_3, window_bounds = array<i64: 2, 1>}, {transform_indices = @transform_4, window_bounds = array<i64: 256, 512>}]} {
    %c0 = arith.constant 0 : index
    %c0_0 = arith.constant 0 : index
    %0 = vector.load %arg2[%c0, %c0_0] : memref<256x2xf32, #tpu.memory_space<vmem>>, vector<256x2xf32>
    %c0_1 = arith.constant 0 : index
    %c0_2 = arith.constant 0 : index
    %1 = vector.load %arg4[%c0_1, %c0_2] : memref<1x2xf32, #tpu.memory_space<vmem>>, vector<1x2xf32>
    %2 = vector.broadcast %1 : vector<1x2xf32> to vector<256x2xf32>
    %3 = arith.mulf %0, %2 : vector<256x2xf32>
    %c0_3 = arith.constant 0 : index
    %c0_4 = arith.constant 0 : index
    %4 = vector.load %arg3[%c0_3, %c0_4] : memref<2x512xf32, #tpu.memory_space<vmem>>, vector<2x512xf32>
    %c0_5 = arith.constant 0 : index
    %c0_6 = arith.constant 0 : index
    %5 = vector.load %arg5[%c0_5, %c0_6] : memref<2x1xf32, #tpu.memory_space<vmem>>, vector<2x1xf32>
    %6 = vector.broadcast %5 : vector<2x1xf32> to vector<2x512xf32>
    %7 = arith.mulf %4, %6 : vector<2x512xf32>
    %8 = vector.extract_strided_slice %3 {offsets = [0, 0], sizes = [256, 1], strides = [1, 1]} : vector<256x2xf32> to vector<256x1xf32>
    %9 = vector.extract_strided_slice %7 {offsets = [0, 0], sizes = [1, 512], strides = [1, 1]} : vector<2x512xf32> to vector<1x512xf32>
    %10 = vector.broadcast %8 : vector<256x1xf32> to vector<256x512xf32>
    %11 = vector.broadcast %9 : vector<1x512xf32> to vector<256x512xf32>
    %12 = arith.subf %10, %11 : vector<256x512xf32>
    %13 = arith.mulf %12, %12 : vector<256x512xf32>
    %14 = vector.extract_strided_slice %3 {offsets = [0, 1], sizes = [256, 1], strides = [1, 1]} : vector<256x2xf32> to vector<256x1xf32>
    %15 = vector.extract_strided_slice %7 {offsets = [1, 0], sizes = [1, 512], strides = [1, 1]} : vector<2x512xf32> to vector<1x512xf32>
    %16 = vector.broadcast %14 : vector<256x1xf32> to vector<256x512xf32>
    %17 = vector.broadcast %15 : vector<1x512xf32> to vector<256x512xf32>
    %18 = arith.subf %16, %17 : vector<256x512xf32>
    %19 = arith.mulf %18, %18 : vector<256x512xf32>
    %20 = arith.addf %13, %19 : vector<256x512xf32>
    %cst = arith.constant -5.000000e-01 : f32
    %21 = vector.broadcast %cst : f32 to vector<256x512xf32>
    %22 = arith.mulf %21, %20 : vector<256x512xf32>
    %23 = math.exp %22 : vector<256x512xf32>
    %c0_7 = arith.constant 0 : index
    %c0_8 = arith.constant 0 : index
    %24 = vector.load %arg6[%c0_7, %c0_8] : memref<256x512xf32, #tpu.memory_space<vmem>>, vector<256x512xf32>
    tpu.vector_store %arg6[%c0_7, %c0_8], %23 {strides = array<i32>} : memref<256x512xf32, #tpu.memory_space<vmem>>, vector<256x512xf32>,
    return
  }
  func.func @transform_0(%arg0: i32, %arg1: i32) -> (i32, i32) {
    %c0_i32 = arith.constant 0 : i32
    %c0_i32_0 = arith.constant 0 : i32
    return %arg0, %c0_i32 : i32, i32
  }
  func.func @transform_1(%arg0: i32, %arg1: i32) -> (i32, i32) {
    %c0_i32 = arith.constant 0 : i32
    %c0_i32_0 = arith.constant 0 : i32
    return %c0_i32, %arg1 : i32, i32
  }
  func.func @transform_2(%arg0: i32, %arg1: i32) -> (i32, i32) {
    %c0_i32 = arith.constant 0 : i32
    %c0_i32_0 = arith.constant 0 : i32
    %c0_i32_1 = arith.constant 0 : i32
    return %c0_i32, %c0_i32_0 : i32, i32
  }
  func.func @transform_3(%arg0: i32, %arg1: i32) -> (i32, i32) {
    %c0_i32 = arith.constant 0 : i32
    %c0_i32_0 = arith.constant 0 : i32
    %c0_i32_1 = arith.constant 0 : i32
    return %c0_i32, %c0_i32_0 : i32, i32
  }
  func.func @transform_4(%arg0: i32, %arg1: i32) -> (i32, i32) {
    %c0_i32 = arith.constant 0 : i32
    return %arg0, %arg1 : i32, i32
  }
}

</mosaic_0001>

<llo_original>
// kernel: tpu_custom_call.1
$region0: #{tpu_custom_call.1}
  #allocation0 [shape = 'u32[]', space=smem, size = 0x4, offset = 0x4, fixed_abs, tag = 'smem constant byte address 0x4 - core index']
  #allocation1 [shape = 'u32[72,128]{1,0:T(1,128)}', space=vmem, size = 0x9000, scoped, tag = 'internal scratch']
  %s0 = inlined_call_operand.vmem [shape: f32[512,2], index: 0, kind: input, shape index: {}]
  %s1 = inlined_call_operand.vmem [shape: f32[2,512], index: 1, kind: input, shape index: {}]
  %s2 = inlined_call_operand.vmem [shape: f32[1,2], index: 2, kind: input, shape index: {}]
  %s3 = inlined_call_operand.vmem [shape: f32[2,1], index: 3, kind: input, shape index: {}]
  %s4 = inlined_call_operand.hbm [shape: f32[512,512], index: 4, kind: output, shape index: {}]
  %s5 = sld [smem:[#allocation0]]
  $region49: #{tpu_custom_call.1} parent=0
    _
  %s7 = ssub.s32 1, %s5
  %s8 = scalar_select 0, %s7, %s5
  $region1: #{tpu_custom_call.1} parent=0
    #allocation2 [shape = 'u8[1048576]{0}', space=vmem, size = 0x100000, scoped, tag = 'output window, operand 0']
    #allocation3 [shape = 's32[2]{0}', space=sflag, size = 0x8, scoped, tag = 'scoped memory for tpu_custom_call.1']
    %9 = vsyncpa [#allocation3], 0
    %s10 = scalar_lea.sflag [#allocation3], 1
    %11 = vsyncpa %s10, 0
    loop: start=0, step=1, limit=4
    $region2: #{tpu_custom_call.1} parent=1 // loop_pre_header
      _
    $region3: #{tpu_custom_call.1} parent=1 // loop_header
      %s13 = sphi 0, %s17
      %p14 = scmp.ge.s32.totalorder %s13, 4
      %s20 = sphi 0, %s32
      %s21 = sphi 0, %s28
      %s22 = sphi 0, %s20
      %s23 = sphi 0, %s21
      %s24 = sphi 0, %s22
      %s25 = sphi 0, %s23
      %s35 = sphi 0, %s37
      %s38 = sphi 0, %s35
      %s39 = sphi 0, %s38
      %s55 = sphi 0, %s39
      %s61 = sphi 0, %s63
      %s64 = sphi 0, %s61
      %s65 = sphi 0, %s64
      %s81 = sphi 0, %s65
      %s85 = sphi 0, %s85
      %s87 = sphi 0, %s85
      %s88 = sphi 0, %s87
      %s102 = sphi 0, %s88
      %s106 = sphi 0, %s106
      %s108 = sphi 0, %s106
      %s109 = sphi 0, %s108
      %s123 = sphi 0, %s109
      %s131 = sphi 0, %s133
      %s134 = sphi 0, %s131
      %s135 = sphi 0, %s134
      %s151 = sphi 0, %s135
    $region4: #{tpu_custom_call.1} parent=1 // loop_header_branch
      %16 = sbr.rel (%p14) target = $region8
    $region5: #{tpu_custom_call.1} parent=1 // loop_body
      %s18 = ssub.s32 %s13, 1
      %s19 = ssub.s32 %s13, 2
      %s26 = sadd.s32 1, %s21
      %p27 = scmp.ge.s32.totalorder %s26, 1
      %s28 = scalar_select %p27, 0, %s26
      %s29 = sadd.s32 1, %s20
      %s30 = scalar_select %p27, %s29, %s20
      %p31 = scmp.ge.s32.totalorder %s30, 2
      %s32 = scalar_select %p31, 0, %s30
      %s33 = ssub.s32 %s20, %s32
      %p34 = scmp.eq.s32.totalorder %s33, 0
      %s36 = sadd.s32 %s35, 1
      %s37 = scalar_select %p34, %s35, %s36
      %p40 = pneg %p34
      %p41 = scmp.eq.s32.totalorder %s13, 1
      %p42 = por %p40, %p41
      %p43 = scmp.ne.s32.totalorder %s35, %s38
      %p44 = scmp.eq.s32.totalorder %s13, 0
      %p45 = por %p43, %p44
      %p46 = scmp.ne.s32.totalorder %s35, %s38
      %p47 = scmp.eq.s32.totalorder %s18, 1
      %p48 = por %p46, %p47
      %p49 = scmp.ne.s32.totalorder %s38, %s39
      %p50 = scmp.eq.s32.totalorder %s18, 0
      %p51 = por %p49, %p50
      %p52 = scmp.ne.s32.totalorder %s38, %s39
      %p53 = scmp.eq.s32.totalorder %s19, 1
      %p54 = por %p52, %p53
      %p56 = scmp.ne.s32.totalorder %s39, %s55
      %p57 = scmp.eq.s32.totalorder %s19, 0
      %p58 = por %p56, %p57
      %s59 = ssub.s32 %s21, %s28
      %p60 = scmp.eq.s32.totalorder %s59, 0
      %s62 = sadd.s32 %s61, 1
      %s63 = scalar_select %p60, %s61, %s62
      %p66 = pneg %p60
      %p67 = scmp.eq.s32.totalorder %s13, 1
      %p68 = por %p66, %p67
      %p69 = scmp.ne.s32.totalorder %s61, %s64
      %p70 = scmp.eq.s32.totalorder %s13, 0
      %p71 = por %p69, %p70
      %p72 = scmp.ne.s32.totalorder %s61, %s64
      %p73 = scmp.eq.s32.totalorder %s18, 1
      %p74 = por %p72, %p73
      %p75 = scmp.ne.s32.totalorder %s64, %s65
      %p76 = scmp.eq.s32.totalorder %s18, 0
      %p77 = por %p75, %p76
      %p78 = scmp.ne.s32.totalorder %s64, %s65
      %p79 = scmp.eq.s32.totalorder %s19, 1
      %p80 = por %p78, %p79
      %p82 = scmp.ne.s32.totalorder %s65, %s81
      %p83 = scmp.eq.s32.totalorder %s19, 0
      %p84 = por %p82, %p83
      %s86 = sadd.s32 %s85, 1
      %p89 = scmp.eq.s32.totalorder %s13, 1
      %p90 = scmp.ne.s32.totalorder %s85, %s87
      %p91 = scmp.eq.s32.totalorder %s13, 0
      %p92 = por %p90, %p91
      %p93 = scmp.ne.s32.totalorder %s85, %s87
      %p94 = scmp.eq.s32.totalorder %s18, 1
      %p95 = por %p93, %p94
      %p96 = scmp.ne.s32.totalorder %s87, %s88
      %p97 = scmp.eq.s32.totalorder %s18, 0
      %p98 = por %p96, %p97
      %p99 = scmp.ne.s32.totalorder %s87, %s88
      %p100 = scmp.eq.s32.totalorder %s19, 1
      %p101 = por %p99, %p100
      %p103 = scmp.ne.s32.totalorder %s88, %s102
      %p104 = scmp.eq.s32.totalorder %s19, 0
      %p105 = por %p103, %p104
      %s107 = sadd.s32 %s106, 1
      %p110 = scmp.eq.s32.totalorder %s13, 1
      %p111 = scmp.ne.s32.totalorder %s106, %s108
      %p112 = scmp.eq.s32.totalorder %s13, 0
      %p113 = por %p111, %p112
      %p114 = scmp.ne.s32.totalorder %s106, %s108
      %p115 = scmp.eq.s32.totalorder %s18, 1
      %p116 = por %p114, %p115
      %p117 = scmp.ne.s32.totalorder %s108, %s109
      %p118 = scmp.eq.s32.totalorder %s18, 0
      %p119 = por %p117, %p118
      %p120 = scmp.ne.s32.totalorder %s108, %s109
      %p121 = scmp.eq.s32.totalorder %s19, 1
      %p122 = por %p120, %p121
      %p124 = scmp.ne.s32.totalorder %s109, %s123
      %p125 = scmp.eq.s32.totalorder %s19, 0
      %p126 = por %p124, %p125
      %s127 = ssub.s32 %s20, %s32
      %s128 = ssub.s32 %s21, %s28
      %s129 = sor.u32 %s127, %s128
      %p130 = scmp.eq.s32.totalorder %s129, 0
      %s132 = sadd.s32 %s131, 1
      %s133 = scalar_select %p130, %s131, %s132
      %p136 = pneg %p130
      %p137 = scmp.eq.s32.totalorder %s13, 1
      %p138 = por %p136, %p137
      %p139 = scmp.ne.s32.totalorder %s131, %s134
      %p140 = scmp.eq.s32.totalorder %s13, 0
      %p141 = por %p139, %p140
      %p142 = scmp.ne.s32.totalorder %s131, %s134
      %p143 = scmp.eq.s32.totalorder %s18, 1
      %p144 = por %p142, %p143
      %p145 = scmp.ne.s32.totalorder %s134, %s135
      %p146 = scmp.eq.s32.totalorder %s18, 0
      %p147 = por %p145, %p146
      %p148 = scmp.ne.s32.totalorder %s134, %s135
      %p149 = scmp.eq.s32.totalorder %s19, 1
      %p150 = por %p148, %p149
      %p152 = scmp.ne.s32.totalorder %s135, %s151
      %p153 = scmp.eq.s32.totalorder %s19, 0
      %p154 = por %p152, %p153
      %p155 = scmp.le.s32.totalorder 1, %s13
      %p156 = scmp.lt.s32.totalorder %s13, 3
      %p157 = pnand %p155, %p156
      %p158 = pneg %p157
      // Predicated region
      $region9: #{tpu_custom_call.1} parent=5 // pred_check
        _
      $region10: #{tpu_custom_call.1} parent=5 // pred_check_branch
        %160 = sbr.rel (%p157) target = $region12
      $region11: #{tpu_custom_call.1} parent=5 // pred_region
        %s161 = ssub.s32 %s13, 1
        // Predicated region
        $region13: #{tpu_custom_call.1} parent=11 // pred_check
          %p162 = pneg %p77
        $region14: #{tpu_custom_call.1} parent=11 // pred_check_branch
          %164 = sbr.rel (%p162) target = $region16
        $region15: #{tpu_custom_call.1} parent=11 // pred_region
          %s165 = smul.u32 4, %s23
          %p166 = scmp.lt.s32.totalorder %s165, 3
          %s167 = scalar_select %p166, %s165, 3
          %s168 = smul.addr %s167, 2
          %s169 = scalar_lea.vmem %s1, %s168
          %s170 = smul.u32 4, %s23
        $region16: #{tpu_custom_call.1} parent=11 // pred_fallthru
          _
        // Predicated region
        $region17: #{tpu_custom_call.1} parent=11 // pred_check
          %p171 = pneg %p98
        $region18: #{tpu_custom_call.1} parent=11 // pred_check_branch
          %173 = sbr.rel (%p171) target = $region20
        $region19: #{tpu_custom_call.1} parent=11 // pred_region
          _
        $region20: #{tpu_custom_call.1} parent=11 // pred_fallthru
          _
        // Predicated region
        $region21: #{tpu_custom_call.1} parent=11 // pred_check
          %p174 = pneg %p119
        $region22: #{tpu_custom_call.1} parent=11 // pred_check_branch
          %176 = sbr.rel (%p174) target = $region24
        $region23: #{tpu_custom_call.1} parent=11 // pred_region
          _
        $region24: #{tpu_custom_call.1} parent=11 // pred_fallthru
          _
      $region12: #{tpu_custom_call.1} parent=5 // pred_fallthru
        _
      %p177 = scmp.lt.s32.totalorder %s13, 2
      // Predicated region
      $region25: #{tpu_custom_call.1} parent=5 // pred_check
        %p178 = pneg %p177
      $region26: #{tpu_custom_call.1} parent=5 // pred_check_branch
        %180 = sbr.rel (%p178) target = $region28
      $region27: #{tpu_custom_call.1} parent=5 // pred_region
        // Predicated region
        $region29: #{tpu_custom_call.1} parent=27 // pred_check
          %p181 = pneg %p45
        $region30: #{tpu_custom_call.1} parent=27 // pred_check_branch
          %183 = sbr.rel (%p181) target = $region32
        $region31: #{tpu_custom_call.1} parent=27 // pred_region
          %s184 = smul.u32 32, %s20
          %p185 = scmp.lt.s32.totalorder %s184, 63
          %s186 = scalar_select %p185, %s184, 63
          %s187 = smul.addr %s186, 8
          %s188 = scalar_lea.vmem %s0, %s187
          %s189 = smul.u32 32, %s20
        $region32: #{tpu_custom_call.1} parent=27 // pred_fallthru
          _
      $region28: #{tpu_custom_call.1} parent=5 // pred_fallthru
        _
      %p190 = scmp.le.s32.totalorder 1, %s13
      %p191 = scmp.lt.s32.totalorder %s13, 3
      %p192 = pnand %p190, %p191
      %p193 = pneg %p192
      // Predicated region
      $region33: #{tpu_custom_call.1} parent=5 // pred_check
        _
      $region34: #{tpu_custom_call.1} parent=5 // pred_check_branch
        %195 = sbr.rel (%p192) target = $region36
      $region35: #{tpu_custom_call.1} parent=5 // pred_region
        %s196 = ssub.s32 %s13, 1
        %s197 = smul.u32 32, %s22
        %p198 = scmp.lt.s32.totalorder %s197, 63
        %s199 = scalar_select %p198, %s197, 63
        %s200 = smul.addr %s199, 8
        %s201 = scalar_lea.vmem %s0, %s200
        %p202 = pneg %p51
        %p203 = pneg %p48
        %s204 = smul.u32 4, %s23
        %p205 = scmp.lt.s32.totalorder %s204, 3
        %s206 = scalar_select %p205, %s204, 3
        %s207 = smul.addr %s206, 2
        %s208 = scalar_lea.vmem %s1, %s207
        %p209 = pneg %p77
        %p210 = pneg %p74
        %p211 = pneg %p98
        %p212 = pneg %p95
        %p213 = pneg %p119
        %p214 = pneg %p116
        %p215 = pneg %p147
        %p216 = pneg %p144
        %s217 = sand.u32 %s134, 1
        %s218 = scalar_lea.sflag [#allocation3], %s217
        %s219 = sand.u32 %s134, 1
        %s220 = smul.addr %s219, 1024
        %s221 = scalar_lea.vmem [#allocation2], %s220
        %s222 = smul.u32 32, %s22
        %p223 = scmp.lt.s32.totalorder %s222, 63
        %s224 = scalar_select %p223, %s222, 63
        %s225 = smul.addr %s224, 8
        %s226 = scalar_lea.vmem %s0, %s225
        %s227 = smul.u32 32, %s22
        %s228 = smul.u32 4, %s23
        %p229 = scmp.lt.s32.totalorder %s228, 3
        %s230 = scalar_select %p229, %s228, 3
        %s231 = smul.addr %s230, 2
        %s232 = scalar_lea.vmem %s1, %s231
        %s233 = smul.u32 4, %s23
        %s234 = smul.u32 32, %s22
        %s235 = smul.u32 4, %s23
        %v236 = vld [vmem:[%s226] sm:$0xff]
        %v237 = vld [vmem:[%s226 + $0x8] sm:$0xff]
        %v238 = vld [vmem:[%s226 + $0x10] sm:$0xff]
        %v239 = vld [vmem:[%s226 + $0x18] sm:$0xff]
        %v240 = vld [vmem:[%s226 + $0x20] sm:$0xff]
        %v241 = vld [vmem:[%s226 + $0x28] sm:$0xff]
        %v242 = vld [vmem:[%s226 + $0x30] sm:$0xff]
        %v243 = vld [vmem:[%s226 + $0x38] sm:$0xff]
        %v244 = vld [vmem:[%s226 + $0x40] sm:$0xff]
        %v245 = vld [vmem:[%s226 + $0x48] sm:$0xff]
        %v246 = vld [vmem:[%s226 + $0x50] sm:$0xff]
        %v247 = vld [vmem:[%s226 + $0x58] sm:$0xff]
        %v248 = vld [vmem:[%s226 + $0x60] sm:$0xff]
        %v249 = vld [vmem:[%s226 + $0x68] sm:$0xff]
        %v250 = vld [vmem:[%s226 + $0x70] sm:$0xff]
        %v251 = vld [vmem:[%s226 + $0x78] sm:$0xff]
        %v252 = vld [vmem:[%s226 + $0x80] sm:$0xff]
        %v253 = vld [vmem:[%s226 + $0x88] sm:$0xff]
        %v254 = vld [vmem:[%s226 + $0x90] sm:$0xff]
        %v255 = vld [vmem:[%s226 + $0x98] sm:$0xff]
        %v256 = vld [vmem:[%s226 + $0xa0] sm:$0xff]
        %v257 = vld [vmem:[%s226 + $0xa8] sm:$0xff]
        %v258 = vld [vmem:[%s226 + $0xb0] sm:$0xff]
        %v259 = vld [vmem:[%s226 + $0xb8] sm:$0xff]
        %v260 = vld [vmem:[%s226 + $0xc0] sm:$0xff]
        %v261 = vld [vmem:[%s226 + $0xc8] sm:$0xff]
        %v262 = vld [vmem:[%s226 + $0xd0] sm:$0xff]
        %v263 = vld [vmem:[%s226 + $0xd8] sm:$0xff]
        %v264 = vld [vmem:[%s226 + $0xe0] sm:$0xff]
        %v265 = vld [vmem:[%s226 + $0xe8] sm:$0xff]
        %v266 = vld [vmem:[%s226 + $0xf0] sm:$0xff]
        %v267 = vld [vmem:[%s226 + $0xf8] sm:$0xff]
        %v268 = vld [vmem:[%s2] sm:$0x1]
        %v270 = vperm.slane %v268, 0
        %v272 = vmul.f32 %v236, %v270
        %v273 = vmul.f32 %v237, %v270
        %v274 = vmul.f32 %v238, %v270
        %v275 = vmul.f32 %v239, %v270
        %v276 = vmul.f32 %v240, %v270
        %v277 = vmul.f32 %v241, %v270
        %v278 = vmul.f32 %v242, %v270
        %v279 = vmul.f32 %v243, %v270
        %v280 = vmul.f32 %v244, %v270
        %v281 = vmul.f32 %v245, %v270
        %v282 = vmul.f32 %v246, %v270
        %v283 = vmul.f32 %v247, %v270
        %v284 = vmul.f32 %v248, %v270
        %v285 = vmul.f32 %v249, %v270
        %v286 = vmul.f32 %v250, %v270
        %v287 = vmul.f32 %v251, %v270
        %v288 = vmul.f32 %v252, %v270
        %v289 = vmul.f32 %v253, %v270
        %v290 = vmul.f32 %v254, %v270
        %v291 = vmul.f32 %v255, %v270
        %v292 = vmul.f32 %v256, %v270
        %v293 = vmul.f32 %v257, %v270
        %v294 = vmul.f32 %v258, %v270
        %v295 = vmul.f32 %v259, %v270
        %v296 = vmul.f32 %v260, %v270
        %v297 = vmul.f32 %v261, %v270
        %v298 = vmul.f32 %v262, %v270
        %v299 = vmul.f32 %v263, %v270
        %v300 = vmul.f32 %v264, %v270
        %v301 = vmul.f32 %v265, %v270
        %v302 = vmul.f32 %v266, %v270
        %v303 = vmul.f32 %v267, %v270
        %v304 = vld [vmem:[%s232] sm:$0xff]
        %v305 = vld [vmem:[%s3] sm:$0x3]
        %307 = vset.pattern.permute.xlu0 0
        %308 = vperm.xlu0 %307, %v305
        %v309 = vpop.permute.xlu0 %308
        %v311 = vunpack.c.l.s4 269488144
        %v312 = vunpack.c.0.s8 %v311
        %v313 = vperm.slane %v309, %v312
        %v315 = vmul.f32 %v304, %v313
        %317 = vset.pattern.permute.xlu0 0
        %318 = vperm.xlu0 %317, %v272
        %v319 = vpop.permute.xlu0 %318
        %322 = vset.pattern.permute.xlu0 0
        %323 = vperm.xlu0 %322, %v273
        %v324 = vpop.permute.xlu0 %323
        %327 = vset.pattern.permute.xlu0 0
        %328 = vperm.xlu0 %327, %v274
        %v329 = vpop.permute.xlu0 %328
        %332 = vset.pattern.permute.xlu0 0
        %333 = vperm.xlu0 %332, %v275
        %v334 = vpop.permute.xlu0 %333
        %337 = vset.pattern.permute.xlu0 0
        %338 = vperm.xlu0 %337, %v276
        %v339 = vpop.permute.xlu0 %338
        %342 = vset.pattern.permute.xlu0 0
        %343 = vperm.xlu0 %342, %v277
        %v344 = vpop.permute.xlu0 %343
        %347 = vset.pattern.permute.xlu0 0
        %348 = vperm.xlu0 %347, %v278
        %v349 = vpop.permute.xlu0 %348
        %352 = vset.pattern.permute.xlu0 0
        %353 = vperm.xlu0 %352, %v279
        %v354 = vpop.permute.xlu0 %353
        %357 = vset.pattern.permute.xlu0 0
        %358 = vperm.xlu0 %357, %v280
        %v359 = vpop.permute.xlu0 %358
        %362 = vset.pattern.permute.xlu0 0
        %363 = vperm.xlu0 %362, %v281
        %v364 = vpop.permute.xlu0 %363
        %367 = vset.pattern.permute.xlu0 0
        %368 = vperm.xlu0 %367, %v282
        %v369 = vpop.permute.xlu0 %368
        %372 = vset.pattern.permute.xlu0 0
        %373 = vperm.xlu0 %372, %v283
        %v374 = vpop.permute.xlu0 %373
        %377 = vset.pattern.permute.xlu0 0
        %378 = vperm.xlu0 %377, %v284
        %v379 = vpop.permute.xlu0 %378
        %382 = vset.pattern.permute.xlu0 0
        %383 = vperm.xlu0 %382, %v285
        %v384 = vpop.permute.xlu0 %383
        %387 = vset.pattern.permute.xlu0 0
        %388 = vperm.xlu0 %387, %v286
        %v389 = vpop.permute.xlu0 %388
        %392 = vset.pattern.permute.xlu0 0
        %393 = vperm.xlu0 %392, %v287
        %v394 = vpop.permute.xlu0 %393
        %397 = vset.pattern.permute.xlu0 0
        %398 = vperm.xlu0 %397, %v288
        %v399 = vpop.permute.xlu0 %398
        %402 = vset.pattern.permute.xlu0 0
        %403 = vperm.xlu0 %402, %v289
        %v404 = vpop.permute.xlu0 %403
        %407 = vset.pattern.permute.xlu0 0
        %408 = vperm.xlu0 %407, %v290
        %v409 = vpop.permute.xlu0 %408
        %412 = vset.pattern.permute.xlu0 0
        %413 = vperm.xlu0 %412, %v291
        %v414 = vpop.permute.xlu0 %413
        %417 = vset.pattern.permute.xlu0 0
        %418 = vperm.xlu0 %417, %v292
        %v419 = vpop.permute.xlu0 %418
        %422 = vset.pattern.permute.xlu0 0
        %423 = vperm.xlu0 %422, %v293
        %v424 = vpop.permute.xlu0 %423
        %427 = vset.pattern.permute.xlu0 0
        %428 = vperm.xlu0 %427, %v294
        %v429 = vpop.permute.xlu0 %428
        %432 = vset.pattern.permute.xlu0 0
        %433 = vperm.xlu0 %432, %v295
        %v434 = vpop.permute.xlu0 %433
        %437 = vset.pattern.permute.xlu0 0
        %438 = vperm.xlu0 %437, %v296
        %v439 = vpop.permute.xlu0 %438
        %442 = vset.pattern.permute.xlu0 0
        %443 = vperm.xlu0 %442, %v297
        %v444 = vpop.permute.xlu0 %443
        %447 = vset.pattern.permute.xlu0 0
        %448 = vperm.xlu0 %447, %v298
        %v449 = vpop.permute.xlu0 %448
        %452 = vset.pattern.permute.xlu0 0
        %453 = vperm.xlu0 %452, %v299
        %v454 = vpop.permute.xlu0 %453
        %457 = vset.pattern.permute.xlu0 0
        %458 = vperm.xlu0 %457, %v300
        %v459 = vpop.permute.xlu0 %458
        %462 = vset.pattern.permute.xlu0 0
        %463 = vperm.xlu0 %462, %v301
        %v464 = vpop.permute.xlu0 %463
        %467 = vset.pattern.permute.xlu0 0
        %468 = vperm.xlu0 %467, %v302
        %v469 = vpop.permute.xlu0 %468
        %472 = vset.pattern.permute.xlu0 0
        %473 = vperm.xlu0 %472, %v303
        %v474 = vpop.permute.xlu0 %473
        %v477 = vperm.slane %v315, 0
        %v478 = vperm.slane %v315, 2
        %v479 = vperm.slane %v315, 4
        %v480 = vperm.slane %v315, 6
        %v485 = vperm.slane %v477, 0
        %v486 = vperm.slane %v478, 0
        %v487 = vperm.slane %v479, 0
        %v488 = vperm.slane %v480, 0
        %v489 = vsub.f32 %v319, %v485
        %v490 = vsub.f32 %v319, %v486
        %v491 = vsub.f32 %v319, %v487
        %v492 = vsub.f32 %v319, %v488
        %v493 = vsub.f32 %v324, %v485
        %v494 = vsub.f32 %v324, %v486
        %v495 = vsub.f32 %v324, %v487
        %v496 = vsub.f32 %v324, %v488
        %v497 = vsub.f32 %v329, %v485
        %v498 = vsub.f32 %v329, %v486
        %v499 = vsub.f32 %v329, %v487
        %v500 = vsub.f32 %v329, %v488
        %v501 = vsub.f32 %v334, %v485
        %v502 = vsub.f32 %v334, %v486
        %v503 = vsub.f32 %v334, %v487
        %v504 = vsub.f32 %v334, %v488
        %v505 = vsub.f32 %v339, %v485
        %v506 = vsub.f32 %v339, %v486
        %v507 = vsub.f32 %v339, %v487
        %v508 = vsub.f32 %v339, %v488
        %v509 = vsub.f32 %v344, %v485
        %v510 = vsub.f32 %v344, %v486
        %v511 = vsub.f32 %v344, %v487
        %v512 = vsub.f32 %v344, %v488
        %v513 = vsub.f32 %v349, %v485
        %v514 = vsub.f32 %v349, %v486
        %v515 = vsub.f32 %v349, %v487
        %v516 = vsub.f32 %v349, %v488
        %v517 = vsub.f32 %v354, %v485
        %v518 = vsub.f32 %v354, %v486
        %v519 = vsub.f32 %v354, %v487
        %v520 = vsub.f32 %v354, %v488
        %v521 = vsub.f32 %v359, %v485
        %v522 = vsub.f32 %v359, %v486
        %v523 = vsub.f32 %v359, %v487
        %v524 = vsub.f32 %v359, %v488
        %v525 = vsub.f32 %v364, %v485
        %v526 = vsub.f32 %v364, %v486
        %v527 = vsub.f32 %v364, %v487
        %v528 = vsub.f32 %v364, %v488
        %v529 = vsub.f32 %v369, %v485
        %v530 = vsub.f32 %v369, %v486
        %v531 = vsub.f32 %v369, %v487
        %v532 = vsub.f32 %v369, %v488
        %v533 = vsub.f32 %v374, %v485
        %v534 = vsub.f32 %v374, %v486
        %v535 = vsub.f32 %v374, %v487
        %v536 = vsub.f32 %v374, %v488
        %v537 = vsub.f32 %v379, %v485
        %v538 = vsub.f32 %v379, %v486
        %v539 = vsub.f32 %v379, %v487
        %v540 = vsub.f32 %v379, %v488
        %v541 = vsub.f32 %v384, %v485
        %v542 = vsub.f32 %v384, %v486
        %v543 = vsub.f32 %v384, %v487
        %v544 = vsub.f32 %v384, %v488
        %v545 = vsub.f32 %v389, %v485
        %v546 = vsub.f32 %v389, %v486
        %v547 = vsub.f32 %v389, %v487
        %v548 = vsub.f32 %v389, %v488
        %v549 = vsub.f32 %v394, %v485
        %v550 = vsub.f32 %v394, %v486
        %v551 = vsub.f32 %v394, %v487
        %v552 = vsub.f32 %v394, %v488
        %v553 = vsub.f32 %v399, %v485
        %v554 = vsub.f32 %v399, %v486
        %v555 = vsub.f32 %v399, %v487
        %v556 = vsub.f32 %v399, %v488
        %v557 = vsub.f32 %v404, %v485
        %v558 = vsub.f32 %v404, %v486
        %v559 = vsub.f32 %v404, %v487
        %v560 = vsub.f32 %v404, %v488
        %v561 = vsub.f32 %v409, %v485
        %v562 = vsub.f32 %v409, %v486
        %v563 = vsub.f32 %v409, %v487
        %v564 = vsub.f32 %v409, %v488
        %v565 = vsub.f32 %v414, %v485
        %v566 = vsub.f32 %v414, %v486
        %v567 = vsub.f32 %v414, %v487
        %v568 = vsub.f32 %v414, %v488
        %v569 = vsub.f32 %v419, %v485
        %v570 = vsub.f32 %v419, %v486
        %v571 = vsub.f32 %v419, %v487
        %v572 = vsub.f32 %v419, %v488
        %v573 = vsub.f32 %v424, %v485
        %v574 = vsub.f32 %v424, %v486
        %v575 = vsub.f32 %v424, %v487
        %v576 = vsub.f32 %v424, %v488
        %v577 = vsub.f32 %v429, %v485
        %v578 = vsub.f32 %v429, %v486
        %v579 = vsub.f32 %v429, %v487
        %v580 = vsub.f32 %v429, %v488
        %v581 = vsub.f32 %v434, %v485
        %v582 = vsub.f32 %v434, %v486
        %v583 = vsub.f32 %v434, %v487
        %v584 = vsub.f32 %v434, %v488
        %v585 = vsub.f32 %v439, %v485
        %v586 = vsub.f32 %v439, %v486
        %v587 = vsub.f32 %v439, %v487
        %v588 = vsub.f32 %v439, %v488
        %v589 = vsub.f32 %v444, %v485
        %v590 = vsub.f32 %v444, %v486
        %v591 = vsub.f32 %v444, %v487
        %v592 = vsub.f32 %v444, %v488
        %v593 = vsub.f32 %v449, %v485
        %v594 = vsub.f32 %v449, %v486
        %v595 = vsub.f32 %v449, %v487
        %v596 = vsub.f32 %v449, %v488
        %v597 = vsub.f32 %v454, %v485
        %v598 = vsub.f32 %v454, %v486
        %v599 = vsub.f32 %v454, %v487
        %v600 = vsub.f32 %v454, %v488
        %v601 = vsub.f32 %v459, %v485
        %v602 = vsub.f32 %v459, %v486
        %v603 = vsub.f32 %v459, %v487
        %v604 = vsub.f32 %v459, %v488
        %v605 = vsub.f32 %v464, %v485
        %v606 = vsub.f32 %v464, %v486
        %v607 = vsub.f32 %v464, %v487
        %v608 = vsub.f32 %v464, %v488
        %v609 = vsub.f32 %v469, %v485
        %v610 = vsub.f32 %v469, %v486
        %v611 = vsub.f32 %v469, %v487
        %v612 = vsub.f32 %v469, %v488
        %v613 = vsub.f32 %v474, %v485
        %v614 = vsub.f32 %v474, %v486
        %v615 = vsub.f32 %v474, %v487
        %v616 = vsub.f32 %v474, %v488
        %v617 = vmul.f32 %v489, %v489
        %v618 = vmul.f32 %v490, %v490
        %v619 = vmul.f32 %v491, %v491
        %v620 = vmul.f32 %v492, %v492
        %v621 = vmul.f32 %v493, %v493
        %v622 = vmul.f32 %v494, %v494
        %v623 = vmul.f32 %v495, %v495
        %v624 = vmul.f32 %v496, %v496
        %v625 = vmul.f32 %v497, %v497
        %v626 = vmul.f32 %v498, %v498
        %v627 = vmul.f32 %v499, %v499
        %v628 = vmul.f32 %v500, %v500
        %v629 = vmul.f32 %v501, %v501
        %v630 = vmul.f32 %v502, %v502
        %v631 = vmul.f32 %v503, %v503
        %v632 = vmul.f32 %v504, %v504
        %v633 = vmul.f32 %v505, %v505
        %v634 = vmul.f32 %v506, %v506
        %v635 = vmul.f32 %v507, %v507
        %v636 = vmul.f32 %v508, %v508
        %v637 = vmul.f32 %v509, %v509
        %v638 = vmul.f32 %v510, %v510
        %v639 = vmul.f32 %v511, %v511
        %v640 = vmul.f32 %v512, %v512
        %v641 = vmul.f32 %v513, %v513
        %v642 = vmul.f32 %v514, %v514
        %v643 = vmul.f32 %v515, %v515
        %v644 = vmul.f32 %v516, %v516
        %v645 = vmul.f32 %v517, %v517
        %v646 = vmul.f32 %v518, %v518
        %v647 = vmul.f32 %v519, %v519
        %v648 = vmul.f32 %v520, %v520
        %v649 = vmul.f32 %v521, %v521
        %v650 = vmul.f32 %v522, %v522
        %v651 = vmul.f32 %v523, %v523
        %v652 = vmul.f32 %v524, %v524
        %v653 = vmul.f32 %v525, %v525
        %v654 = vmul.f32 %v526, %v526
        %v655 = vmul.f32 %v527, %v527
        %v656 = vmul.f32 %v528, %v528
        %v657 = vmul.f32 %v529, %v529
        %v658 = vmul.f32 %v530, %v530
        %v659 = vmul.f32 %v531, %v531
        %v660 = vmul.f32 %v532, %v532
        %v661 = vmul.f32 %v533, %v533
        %v662 = vmul.f32 %v534, %v534
        %v663 = vmul.f32 %v535, %v535
        %v664 = vmul.f32 %v536, %v536
        %v665 = vmul.f32 %v537, %v537
        %v666 = vmul.f32 %v538, %v538
        %v667 = vmul.f32 %v539, %v539
        %v668 = vmul.f32 %v540, %v540
        %v669 = vmul.f32 %v541, %v541
        %v670 = vmul.f32 %v542, %v542
        %v671 = vmul.f32 %v543, %v543
        %v672 = vmul.f32 %v544, %v544
        %v673 = vmul.f32 %v545, %v545
        %v674 = vmul.f32 %v546, %v546
        %v675 = vmul.f32 %v547, %v547
        %v676 = vmul.f32 %v548, %v548
        %v677 = vmul.f32 %v549, %v549
        %v678 = vmul.f32 %v550, %v550
        %v679 = vmul.f32 %v551, %v551
        %v680 = vmul.f32 %v552, %v552
        %v681 = vmul.f32 %v553, %v553
        %v682 = vmul.f32 %v554, %v554
        %v683 = vmul.f32 %v555, %v555
        %v684 = vmul.f32 %v556, %v556
        %v685 = vmul.f32 %v557, %v557
        %v686 = vmul.f32 %v558, %v558
        %v687 = vmul.f32 %v559, %v559
        %v688 = vmul.f32 %v560, %v560
        %v689 = vmul.f32 %v561, %v561
        %v690 = vmul.f32 %v562, %v562
        %v691 = vmul.f32 %v563, %v563
        %v692 = vmul.f32 %v564, %v564
        %v693 = vmul.f32 %v565, %v565
        %v694 = vmul.f32 %v566, %v566
        %v695 = vmul.f32 %v567, %v567
        %v696 = vmul.f32 %v568, %v568
        %v697 = vmul.f32 %v569, %v569
        %v698 = vmul.f32 %v570, %v570
        %v699 = vmul.f32 %v571, %v571
        %v700 = vmul.f32 %v572, %v572
        %v701 = vmul.f32 %v573, %v573
        %v702 = vmul.f32 %v574, %v574
        %v703 = vmul.f32 %v575, %v575
        %v704 = vmul.f32 %v576, %v576
        %v705 = vmul.f32 %v577, %v577
        %v706 = vmul.f32 %v578, %v578
        %v707 = vmul.f32 %v579, %v579
        %v708 = vmul.f32 %v580, %v580
        %v709 = vmul.f32 %v581, %v581
        %v710 = vmul.f32 %v582, %v582
        %v711 = vmul.f32 %v583, %v583
        %v712 = vmul.f32 %v584, %v584
        %v713 = vmul.f32 %v585, %v585
        %v714 = vmul.f32 %v586, %v586
        %v715 = vmul.f32 %v587, %v587
        %v716 = vmul.f32 %v588, %v588
        %v717 = vmul.f32 %v589, %v589
        %v718 = vmul.f32 %v590, %v590
        %v719 = vmul.f32 %v591, %v591
        %v720 = vmul.f32 %v592, %v592
        %v721 = vmul.f32 %v593, %v593
        %v722 = vmul.f32 %v594, %v594
        %v723 = vmul.f32 %v595, %v595
        %v724 = vmul.f32 %v596, %v596
        %v725 = vmul.f32 %v597, %v597
        %v726 = vmul.f32 %v598, %v598
        %v727 = vmul.f32 %v599, %v599
        %v728 = vmul.f32 %v600, %v600
        %v729 = vmul.f32 %v601, %v601
        %v730 = vmul.f32 %v602, %v602
        %v731 = vmul.f32 %v603, %v603
        %v732 = vmul.f32 %v604, %v604
        %v733 = vmul.f32 %v605, %v605
        %v734 = vmul.f32 %v606, %v606
        %v735 = vmul.f32 %v607, %v607
        %v736 = vmul.f32 %v608, %v608
        %v737 = vmul.f32 %v609, %v609
        %v738 = vmul.f32 %v610, %v610
        %v739 = vmul.f32 %v611, %v611
        %v740 = vmul.f32 %v612, %v612
        %v741 = vmul.f32 %v613, %v613
        %v742 = vmul.f32 %v614, %v614
        %v743 = vmul.f32 %v615, %v615
        %v744 = vmul.f32 %v616, %v616
        %745 = vset.pattern.permute.xlu0 1
        %746 = vperm.xlu0 %745, %v272
        %v747 = vpop.permute.xlu0 %746
        %749 = vset.pattern.permute.xlu0 1
        %750 = vperm.xlu0 %749, %v273
        %v751 = vpop.permute.xlu0 %750
        %753 = vset.pattern.permute.xlu0 1
        %754 = vperm.xlu0 %753, %v274
        %v755 = vpop.permute.xlu0 %754
        %757 = vset.pattern.permute.xlu0 1
        %758 = vperm.xlu0 %757, %v275
        %v759 = vpop.permute.xlu0 %758
        %761 = vset.pattern.permute.xlu0 1
        %762 = vperm.xlu0 %761, %v276
        %v763 = vpop.permute.xlu0 %762
        %765 = vset.pattern.permute.xlu0 1
        %766 = vperm.xlu0 %765, %v277
        %v767 = vpop.permute.xlu0 %766
        %769 = vset.pattern.permute.xlu0 1
        %770 = vperm.xlu0 %769, %v278
        %v771 = vpop.permute.xlu0 %770
        %773 = vset.pattern.permute.xlu0 1
        %774 = vperm.xlu0 %773, %v279
        %v775 = vpop.permute.xlu0 %774
        %777 = vset.pattern.permute.xlu0 1
        %778 = vperm.xlu0 %777, %v280
        %v779 = vpop.permute.xlu0 %778
        %781 = vset.pattern.permute.xlu0 1
        %782 = vperm.xlu0 %781, %v281
        %v783 = vpop.permute.xlu0 %782
        %785 = vset.pattern.permute.xlu0 1
        %786 = vperm.xlu0 %785, %v282
        %v787 = vpop.permute.xlu0 %786
        %789 = vset.pattern.permute.xlu0 1
        %790 = vperm.xlu0 %789, %v283
        %v791 = vpop.permute.xlu0 %790
        %793 = vset.pattern.permute.xlu0 1
        %794 = vperm.xlu0 %793, %v284
        %v795 = vpop.permute.xlu0 %794
        %797 = vset.pattern.permute.xlu0 1
        %798 = vperm.xlu0 %797, %v285
        %v799 = vpop.permute.xlu0 %798
        %801 = vset.pattern.permute.xlu0 1
        %802 = vperm.xlu0 %801, %v286
        %v803 = vpop.permute.xlu0 %802
        %805 = vset.pattern.permute.xlu0 1
        %806 = vperm.xlu0 %805, %v287
        %v807 = vpop.permute.xlu0 %806
        %809 = vset.pattern.permute.xlu0 1
        %810 = vperm.xlu0 %809, %v288
        %v811 = vpop.permute.xlu0 %810
        %813 = vset.pattern.permute.xlu0 1
        %814 = vperm.xlu0 %813, %v289
        %v815 = vpop.permute.xlu0 %814
        %817 = vset.pattern.permute.xlu0 1
        %818 = vperm.xlu0 %817, %v290
        %v819 = vpop.permute.xlu0 %818
        %821 = vset.pattern.permute.xlu0 1
        %822 = vperm.xlu0 %821, %v291
        %v823 = vpop.permute.xlu0 %822
        %825 = vset.pattern.permute.xlu0 1
        %826 = vperm.xlu0 %825, %v292
        %v827 = vpop.permute.xlu0 %826
        %829 = vset.pattern.permute.xlu0 1
        %830 = vperm.xlu0 %829, %v293
        %v831 = vpop.permute.xlu0 %830
        %833 = vset.pattern.permute.xlu0 1
        %834 = vperm.xlu0 %833, %v294
        %v835 = vpop.permute.xlu0 %834
        %837 = vset.pattern.permute.xlu0 1
        %838 = vperm.xlu0 %837, %v295
        %v839 = vpop.permute.xlu0 %838
        %841 = vset.pattern.permute.xlu0 1
        %842 = vperm.xlu0 %841, %v296
        %v843 = vpop.permute.xlu0 %842
        %845 = vset.pattern.permute.xlu0 1
        %846 = vperm.xlu0 %845, %v297
        %v847 = vpop.permute.xlu0 %846
        %849 = vset.pattern.permute.xlu0 1
        %850 = vperm.xlu0 %849, %v298
        %v851 = vpop.permute.xlu0 %850
        %853 = vset.pattern.permute.xlu0 1
        %854 = vperm.xlu0 %853, %v299
        %v855 = vpop.permute.xlu0 %854
        %857 = vset.pattern.permute.xlu0 1
        %858 = vperm.xlu0 %857, %v300
        %v859 = vpop.permute.xlu0 %858
        %861 = vset.pattern.permute.xlu0 1
        %862 = vperm.xlu0 %861, %v301
        %v863 = vpop.permute.xlu0 %862
        %865 = vset.pattern.permute.xlu0 1
        %866 = vperm.xlu0 %865, %v302
        %v867 = vpop.permute.xlu0 %866
        %869 = vset.pattern.permute.xlu0 1
        %870 = vperm.xlu0 %869, %v303
        %v871 = vpop.permute.xlu0 %870
        %v873 = vperm.slane %v315, 1
        %v874 = vperm.slane %v315, 3
        %v875 = vperm.slane %v315, 5
        %v876 = vperm.slane %v315, 7
        %v881 = vperm.slane %v873, 1
        %v882 = vperm.slane %v874, 1
        %v883 = vperm.slane %v875, 1
        %v884 = vperm.slane %v876, 1
        %v885 = vsub.f32 %v747, %v881
        %v886 = vsub.f32 %v747, %v882
        %v887 = vsub.f32 %v747, %v883
        %v888 = vsub.f32 %v747, %v884
        %v889 = vsub.f32 %v751, %v881
        %v890 = vsub.f32 %v751, %v882
        %v891 = vsub.f32 %v751, %v883
        %v892 = vsub.f32 %v751, %v884
        %v893 = vsub.f32 %v755, %v881
        %v894 = vsub.f32 %v755, %v882
        %v895 = vsub.f32 %v755, %v883
        %v896 = vsub.f32 %v755, %v884
        %v897 = vsub.f32 %v759, %v881
        %v898 = vsub.f32 %v759, %v882
        %v899 = vsub.f32 %v759, %v883
        %v900 = vsub.f32 %v759, %v884
        %v901 = vsub.f32 %v763, %v881
        %v902 = vsub.f32 %v763, %v882
        %v903 = vsub.f32 %v763, %v883
        %v904 = vsub.f32 %v763, %v884
        %v905 = vsub.f32 %v767, %v881
        %v906 = vsub.f32 %v767, %v882
        %v907 = vsub.f32 %v767, %v883
        %v908 = vsub.f32 %v767, %v884
        %v909 = vsub.f32 %v771, %v881
        %v910 = vsub.f32 %v771, %v882
        %v911 = vsub.f32 %v771, %v883
        %v912 = vsub.f32 %v771, %v884
        %v913 = vsub.f32 %v775, %v881
        %v914 = vsub.f32 %v775, %v882
        %v915 = vsub.f32 %v775, %v883
        %v916 = vsub.f32 %v775, %v884
        %v917 = vsub.f32 %v779, %v881
        %v918 = vsub.f32 %v779, %v882
        %v919 = vsub.f32 %v779, %v883
        %v920 = vsub.f32 %v779, %v884
        %v921 = vsub.f32 %v783, %v881
        %v922 = vsub.f32 %v783, %v882
        %v923 = vsub.f32 %v783, %v883
        %v924 = vsub.f32 %v783, %v884
        %v925 = vsub.f32 %v787, %v881
        %v926 = vsub.f32 %v787, %v882
        %v927 = vsub.f32 %v787, %v883
        %v928 = vsub.f32 %v787, %v884
        %v929 = vsub.f32 %v791, %v881
        %v930 = vsub.f32 %v791, %v882
        %v931 = vsub.f32 %v791, %v883
        %v932 = vsub.f32 %v791, %v884
        %v933 = vsub.f32 %v795, %v881
        %v934 = vsub.f32 %v795, %v882
        %v935 = vsub.f32 %v795, %v883
        %v936 = vsub.f32 %v795, %v884
        %v937 = vsub.f32 %v799, %v881
        %v938 = vsub.f32 %v799, %v882
        %v939 = vsub.f32 %v799, %v883
        %v940 = vsub.f32 %v799, %v884
        %v941 = vsub.f32 %v803, %v881
        %v942 = vsub.f32 %v803, %v882
        %v943 = vsub.f32 %v803, %v883
        %v944 = vsub.f32 %v803, %v884
        %v945 = vsub.f32 %v807, %v881
        %v946 = vsub.f32 %v807, %v882
        %v947 = vsub.f32 %v807, %v883
        %v948 = vsub.f32 %v807, %v884
        %v949 = vsub.f32 %v811, %v881
        %v950 = vsub.f32 %v811, %v882
        %v951 = vsub.f32 %v811, %v883
        %v952 = vsub.f32 %v811, %v884
        %v953 = vsub.f32 %v815, %v881
        %v954 = vsub.f32 %v815, %v882
        %v955 = vsub.f32 %v815, %v883
        %v956 = vsub.f32 %v815, %v884
        %v957 = vsub.f32 %v819, %v881
        %v958 = vsub.f32 %v819, %v882
        %v959 = vsub.f32 %v819, %v883
        %v960 = vsub.f32 %v819, %v884
        %v961 = vsub.f32 %v823, %v881
        %v962 = vsub.f32 %v823, %v882
        %v963 = vsub.f32 %v823, %v883
        %v964 = vsub.f32 %v823, %v884
        %v965 = vsub.f32 %v827, %v881
        %v966 = vsub.f32 %v827, %v882
        %v967 = vsub.f32 %v827, %v883
        %v968 = vsub.f32 %v827, %v884
        %v969 = vsub.f32 %v831, %v881
        %v970 = vsub.f32 %v831, %v882
        %v971 = vsub.f32 %v831, %v883
        %v972 = vsub.f32 %v831, %v884
        %v973 = vsub.f32 %v835, %v881
        %v974 = vsub.f32 %v835, %v882
        %v975 = vsub.f32 %v835, %v883
        %v976 = vsub.f32 %v835, %v884
        %v977 = vsub.f32 %v839, %v881
        %v978 = vsub.f32 %v839, %v882
        %v979 = vsub.f32 %v839, %v883
        %v980 = vsub.f32 %v839, %v884
        %v981 = vsub.f32 %v843, %v881
        %v982 = vsub.f32 %v843, %v882
        %v983 = vsub.f32 %v843, %v883
        %v984 = vsub.f32 %v843, %v884
        %v985 = vsub.f32 %v847, %v881
        %v986 = vsub.f32 %v847, %v882
        %v987 = vsub.f32 %v847, %v883
        %v988 = vsub.f32 %v847, %v884
        %v989 = vsub.f32 %v851, %v881
        %v990 = vsub.f32 %v851, %v882
        %v991 = vsub.f32 %v851, %v883
        %v992 = vsub.f32 %v851, %v884
        %v993 = vsub.f32 %v855, %v881
        %v994 = vsub.f32 %v855, %v882
        %v995 = vsub.f32 %v855, %v883
        %v996 = vsub.f32 %v855, %v884
        %v997 = vsub.f32 %v859, %v881
        %v998 = vsub.f32 %v859, %v882
        %v999 = vsub.f32 %v859, %v883
        %v1000 = vsub.f32 %v859, %v884
        %v1001 = vsub.f32 %v863, %v881
        %v1002 = vsub.f32 %v863, %v882
        %v1003 = vsub.f32 %v863, %v883
        %v1004 = vsub.f32 %v863, %v884
        %v1005 = vsub.f32 %v867, %v881
        %v1006 = vsub.f32 %v867, %v882
        %v1007 = vsub.f32 %v867, %v883
        %v1008 = vsub.f32 %v867, %v884
        %v1009 = vsub.f32 %v871, %v881
        %v1010 = vsub.f32 %v871, %v882
        %v1011 = vsub.f32 %v871, %v883
        %v1012 = vsub.f32 %v871, %v884
        %v1013 = vmul.f32 %v885, %v885
        %v1014 = vmul.f32 %v886, %v886
        %v1015 = vmul.f32 %v887, %v887
        %v1016 = vmul.f32 %v888, %v888
        %v1017 = vmul.f32 %v889, %v889
        %v1018 = vmul.f32 %v890, %v890
        %v1019 = vmul.f32 %v891, %v891
        %v1020 = vmul.f32 %v892, %v892
        %v1021 = vmul.f32 %v893, %v893
        %v1022 = vmul.f32 %v894, %v894
        %v1023 = vmul.f32 %v895, %v895
        %v1024 = vmul.f32 %v896, %v896
        %v1025 = vmul.f32 %v897, %v897
        %v1026 = vmul.f32 %v898, %v898
        %v1027 = vmul.f32 %v899, %v899
        %v1028 = vmul.f32 %v900, %v900
        %v1029 = vmul.f32 %v901, %v901
        %v1030 = vmul.f32 %v902, %v902
        %v1031 = vmul.f32 %v903, %v903
        %v1032 = vmul.f32 %v904, %v904
        %v1033 = vmul.f32 %v905, %v905
        %v1034 = vmul.f32 %v906, %v906
        %v1035 = vmul.f32 %v907, %v907
        %v1036 = vmul.f32 %v908, %v908
        %v1037 = vmul.f32 %v909, %v909
        %v1038 = vmul.f32 %v910, %v910
        %v1039 = vmul.f32 %v911, %v911
        %v1040 = vmul.f32 %v912, %v912
        %v1041 = vmul.f32 %v913, %v913
        %v1042 = vmul.f32 %v914, %v914
        %v1043 = vmul.f32 %v915, %v915
        %v1044 = vmul.f32 %v916, %v916
        %v1045 = vmul.f32 %v917, %v917
        %v1046 = vmul.f32 %v918, %v918
        %v1047 = vmul.f32 %v919, %v919
        %v1048 = vmul.f32 %v920, %v920
        %v1049 = vmul.f32 %v921, %v921
        %v1050 = vmul.f32 %v922, %v922
        %v1051 = vmul.f32 %v923, %v923
        %v1052 = vmul.f32 %v924, %v924
        %v1053 = vmul.f32 %v925, %v925
        %v1054 = vmul.f32 %v926, %v926
        %v1055 = vmul.f32 %v927, %v927
        %v1056 = vmul.f32 %v928, %v928
        %v1057 = vmul.f32 %v929, %v929
        %v1058 = vmul.f32 %v930, %v930
        %v1059 = vmul.f32 %v931, %v931
        %v1060 = vmul.f32 %v932, %v932
        %v1061 = vmul.f32 %v933, %v933
        %v1062 = vmul.f32 %v934, %v934
        %v1063 = vmul.f32 %v935, %v935
        %v1064 = vmul.f32 %v936, %v936
        %v1065 = vmul.f32 %v937, %v937
        %v1066 = vmul.f32 %v938, %v938
        %v1067 = vmul.f32 %v939, %v939
        %v1068 = vmul.f32 %v940, %v940
        %v1069 = vmul.f32 %v941, %v941
        %v1070 = vmul.f32 %v942, %v942
        %v1071 = vmul.f32 %v943, %v943
        %v1072 = vmul.f32 %v944, %v944
        %v1073 = vmul.f32 %v945, %v945
        %v1074 = vmul.f32 %v946, %v946
        %v1075 = vmul.f32 %v947, %v947
        %v1076 = vmul.f32 %v948, %v948
        %v1077 = vmul.f32 %v949, %v949
        %v1078 = vmul.f32 %v950, %v950
        %v1079 = vmul.f32 %v951, %v951
        %v1080 = vmul.f32 %v952, %v952
        %v1081 = vmul.f32 %v953, %v953
        %v1082 = vmul.f32 %v954, %v954
        %v1083 = vmul.f32 %v955, %v955
        %v1084 = vmul.f32 %v956, %v956
        %v1085 = vmul.f32 %v957, %v957
        %v1086 = vmul.f32 %v958, %v958
        %v1087 = vmul.f32 %v959, %v959
        %v1088 = vmul.f32 %v960, %v960
        %v1089 = vmul.f32 %v961, %v961
        %v1090 = vmul.f32 %v962, %v962
        %v1091 = vmul.f32 %v963, %v963
        %v1092 = vmul.f32 %v964, %v964
        %v1093 = vmul.f32 %v965, %v965
        %v1094 = vmul.f32 %v966, %v966
        %v1095 = vmul.f32 %v967, %v967
        %v1096 = vmul.f32 %v968, %v968
        %v1097 = vmul.f32 %v969, %v969
        %v1098 = vmul.f32 %v970, %v970
        %v1099 = vmul.f32 %v971, %v971
        %v1100 = vmul.f32 %v972, %v972
        %v1101 = vmul.f32 %v973, %v973
        %v1102 = vmul.f32 %v974, %v974
        %v1103 = vmul.f32 %v975, %v975
        %v1104 = vmul.f32 %v976, %v976
        %v1105 = vmul.f32 %v977, %v977
        %v1106 = vmul.f32 %v978, %v978
        %v1107 = vmul.f32 %v979, %v979
        %v1108 = vmul.f32 %v980, %v980
        %v1109 = vmul.f32 %v981, %v981
        %v1110 = vmul.f32 %v982, %v982
        %v1111 = vmul.f32 %v983, %v983
        %v1112 = vmul.f32 %v984, %v984
        %v1113 = vmul.f32 %v985, %v985
        %v1114 = vmul.f32 %v986, %v986
        %v1115 = vmul.f32 %v987, %v987
        %v1116 = vmul.f32 %v988, %v988
        %v1117 = vmul.f32 %v989, %v989
        %v1118 = vmul.f32 %v990, %v990
        %v1119 = vmul.f32 %v991, %v991
        %v1120 = vmul.f32 %v992, %v992
        %v1121 = vmul.f32 %v993, %v993
        %v1122 = vmul.f32 %v994, %v994
        %v1123 = vmul.f32 %v995, %v995
        %v1124 = vmul.f32 %v996, %v996
        %v1125 = vmul.f32 %v997, %v997
        %v1126 = vmul.f32 %v998, %v998
        %v1127 = vmul.f32 %v999, %v999
        %v1128 = vmul.f32 %v1000, %v1000
        %v1129 = vmul.f32 %v1001, %v1001
        %v1130 = vmul.f32 %v1002, %v1002
        %v1131 = vmul.f32 %v1003, %v1003
        %v1132 = vmul.f32 %v1004, %v1004
        %v1133 = vmul.f32 %v1005, %v1005
        %v1134 = vmul.f32 %v1006, %v1006
        %v1135 = vmul.f32 %v1007, %v1007
        %v1136 = vmul.f32 %v1008, %v1008
        %v1137 = vmul.f32 %v1009, %v1009
        %v1138 = vmul.f32 %v1010, %v1010
        %v1139 = vmul.f32 %v1011, %v1011
        %v1140 = vmul.f32 %v1012, %v1012
        %v1141 = vadd.f32 %v617, %v1013
        %v1142 = vadd.f32 %v618, %v1014
        %v1143 = vadd.f32 %v619, %v1015
        %v1144 = vadd.f32 %v620, %v1016
        %v1145 = vadd.f32 %v621, %v1017
        %v1146 = vadd.f32 %v622, %v1018
        %v1147 = vadd.f32 %v623, %v1019
        %v1148 = vadd.f32 %v624, %v1020
        %v1149 = vadd.f32 %v625, %v1021
        %v1150 = vadd.f32 %v626, %v1022
        %v1151 = vadd.f32 %v627, %v1023
        %v1152 = vadd.f32 %v628, %v1024
        %v1153 = vadd.f32 %v629, %v1025
        %v1154 = vadd.f32 %v630, %v1026
        %v1155 = vadd.f32 %v631, %v1027
        %v1156 = vadd.f32 %v632, %v1028
        %v1157 = vadd.f32 %v633, %v1029
        %v1158 = vadd.f32 %v634, %v1030
        %v1159 = vadd.f32 %v635, %v1031
        %v1160 = vadd.f32 %v636, %v1032
        %v1161 = vadd.f32 %v637, %v1033
        %v1162 = vadd.f32 %v638, %v1034
        %v1163 = vadd.f32 %v639, %v1035
        %v1164 = vadd.f32 %v640, %v1036
        %v1165 = vadd.f32 %v641, %v1037
        %v1166 = vadd.f32 %v642, %v1038
        %v1167 = vadd.f32 %v643, %v1039
        %v1168 = vadd.f32 %v644, %v1040
        %v1169 = vadd.f32 %v645, %v1041
        %v1170 = vadd.f32 %v646, %v1042
        %v1171 = vadd.f32 %v647, %v1043
        %v1172 = vadd.f32 %v648, %v1044
        %v1173 = vadd.f32 %v649, %v1045
        %v1174 = vadd.f32 %v650, %v1046
        %v1175 = vadd.f32 %v651, %v1047
        %v1176 = vadd.f32 %v652, %v1048
        %v1177 = vadd.f32 %v653, %v1049
        %v1178 = vadd.f32 %v654, %v1050
        %v1179 = vadd.f32 %v655, %v1051
        %v1180 = vadd.f32 %v656, %v1052
        %v1181 = vadd.f32 %v657, %v1053
        %v1182 = vadd.f32 %v658, %v1054
        %v1183 = vadd.f32 %v659, %v1055
        %v1184 = vadd.f32 %v660, %v1056
        %v1185 = vadd.f32 %v661, %v1057
        %v1186 = vadd.f32 %v662, %v1058
        %v1187 = vadd.f32 %v663, %v1059
        %v1188 = vadd.f32 %v664, %v1060
        %v1189 = vadd.f32 %v665, %v1061
        %v1190 = vadd.f32 %v666, %v1062
        %v1191 = vadd.f32 %v667, %v1063
        %v1192 = vadd.f32 %v668, %v1064
        %v1193 = vadd.f32 %v669, %v1065
        %v1194 = vadd.f32 %v670, %v1066
        %v1195 = vadd.f32 %v671, %v1067
        %v1196 = vadd.f32 %v672, %v1068
        %v1197 = vadd.f32 %v673, %v1069
        %v1198 = vadd.f32 %v674, %v1070
        %v1199 = vadd.f32 %v675, %v1071
        %v1200 = vadd.f32 %v676, %v1072
        %v1201 = vadd.f32 %v677, %v1073
        %v1202 = vadd.f32 %v678, %v1074
        %v1203 = vadd.f32 %v679, %v1075
        %v1204 = vadd.f32 %v680, %v1076
        %v1205 = vadd.f32 %v681, %v1077
        %v1206 = vadd.f32 %v682, %v1078
        %v1207 = vadd.f32 %v683, %v1079
        %v1208 = vadd.f32 %v684, %v1080
        %v1209 = vadd.f32 %v685, %v1081
        %v1210 = vadd.f32 %v686, %v1082
        %v1211 = vadd.f32 %v687, %v1083
        %v1212 = vadd.f32 %v688, %v1084
        %v1213 = vadd.f32 %v689, %v1085
        %v1214 = vadd.f32 %v690, %v1086
        %v1215 = vadd.f32 %v691, %v1087
        %v1216 = vadd.f32 %v692, %v1088
        %v1217 = vadd.f32 %v693, %v1089
        %v1218 = vadd.f32 %v694, %v1090
        %v1219 = vadd.f32 %v695, %v1091
        %v1220 = vadd.f32 %v696, %v1092
        %v1221 = vadd.f32 %v697, %v1093
        %v1222 = vadd.f32 %v698, %v1094
        %v1223 = vadd.f32 %v699, %v1095
        %v1224 = vadd.f32 %v700, %v1096
        %v1225 = vadd.f32 %v701, %v1097
        %v1226 = vadd.f32 %v702, %v1098
        %v1227 = vadd.f32 %v703, %v1099
        %v1228 = vadd.f32 %v704, %v1100
        %v1229 = vadd.f32 %v705, %v1101
        %v1230 = vadd.f32 %v706, %v1102
        %v1231 = vadd.f32 %v707, %v1103
        %v1232 = vadd.f32 %v708, %v1104
        %v1233 = vadd.f32 %v709, %v1105
        %v1234 = vadd.f32 %v710, %v1106
        %v1235 = vadd.f32 %v711, %v1107
        %v1236 = vadd.f32 %v712, %v1108
        %v1237 = vadd.f32 %v713, %v1109
        %v1238 = vadd.f32 %v714, %v1110
        %v1239 = vadd.f32 %v715, %v1111
        %v1240 = vadd.f32 %v716, %v1112
        %v1241 = vadd.f32 %v717, %v1113
        %v1242 = vadd.f32 %v718, %v1114
        %v1243 = vadd.f32 %v719, %v1115
        %v1244 = vadd.f32 %v720, %v1116
        %v1245 = vadd.f32 %v721, %v1117
        %v1246 = vadd.f32 %v722, %v1118
        %v1247 = vadd.f32 %v723, %v1119
        %v1248 = vadd.f32 %v724, %v1120
        %v1249 = vadd.f32 %v725, %v1121
        %v1250 = vadd.f32 %v726, %v1122
        %v1251 = vadd.f32 %v727, %v1123
        %v1252 = vadd.f32 %v728, %v1124
        %v1253 = vadd.f32 %v729, %v1125
        %v1254 = vadd.f32 %v730, %v1126
        %v1255 = vadd.f32 %v731, %v1127
        %v1256 = vadd.f32 %v732, %v1128
        %v1257 = vadd.f32 %v733, %v1129
        %v1258 = vadd.f32 %v734, %v1130
        %v1259 = vadd.f32 %v735, %v1131
        %v1260 = vadd.f32 %v736, %v1132
        %v1261 = vadd.f32 %v737, %v1133
        %v1262 = vadd.f32 %v738, %v1134
        %v1263 = vadd.f32 %v739, %v1135
        %v1264 = vadd.f32 %v740, %v1136
        %v1265 = vadd.f32 %v741, %v1137
        %v1266 = vadd.f32 %v742, %v1138
        %v1267 = vadd.f32 %v743, %v1139
        %v1268 = vadd.f32 %v744, %v1140
        %v1269 = vmul.f32 %v1141, -0.5
        %v1270 = vmul.f32 %v1142, -0.5
        %v1271 = vmul.f32 %v1143, -0.5
        %v1272 = vmul.f32 %v1144, -0.5
        %v1273 = vmul.f32 %v1145, -0.5
        %v1274 = vmul.f32 %v1146, -0.5
        %v1275 = vmul.f32 %v1147, -0.5
        %v1276 = vmul.f32 %v1148, -0.5
        %v1277 = vmul.f32 %v1149, -0.5
        %v1278 = vmul.f32 %v1150, -0.5
        %v1279 = vmul.f32 %v1151, -0.5
        %v1280 = vmul.f32 %v1152, -0.5
        %v1281 = vmul.f32 %v1153, -0.5
        %v1282 = vmul.f32 %v1154, -0.5
        %v1283 = vmul.f32 %v1155, -0.5
        %v1284 = vmul.f32 %v1156, -0.5
        %v1285 = vmul.f32 %v1157, -0.5
        %v1286 = vmul.f32 %v1158, -0.5
        %v1287 = vmul.f32 %v1159, -0.5
        %v1288 = vmul.f32 %v1160, -0.5
        %v1289 = vmul.f32 %v1161, -0.5
        %v1290 = vmul.f32 %v1162, -0.5
        %v1291 = vmul.f32 %v1163, -0.5
        %v1292 = vmul.f32 %v1164, -0.5
        %v1293 = vmul.f32 %v1165, -0.5
        %v1294 = vmul.f32 %v1166, -0.5
        %v1295 = vmul.f32 %v1167, -0.5
        %v1296 = vmul.f32 %v1168, -0.5
        %v1297 = vmul.f32 %v1169, -0.5
        %v1298 = vmul.f32 %v1170, -0.5
        %v1299 = vmul.f32 %v1171, -0.5
        %v1300 = vmul.f32 %v1172, -0.5
        %v1301 = vmul.f32 %v1173, -0.5
        %v1302 = vmul.f32 %v1174, -0.5
        %v1303 = vmul.f32 %v1175, -0.5
        %v1304 = vmul.f32 %v1176, -0.5
        %v1305 = vmul.f32 %v1177, -0.5
        %v1306 = vmul.f32 %v1178, -0.5
        %v1307 = vmul.f32 %v1179, -0.5
        %v1308 = vmul.f32 %v1180, -0.5
        %v1309 = vmul.f32 %v1181, -0.5
        %v1310 = vmul.f32 %v1182, -0.5
        %v1311 = vmul.f32 %v1183, -0.5
        %v1312 = vmul.f32 %v1184, -0.5
        %v1313 = vmul.f32 %v1185, -0.5
        %v1314 = vmul.f32 %v1186, -0.5
        %v1315 = vmul.f32 %v1187, -0.5
        %v1316 = vmul.f32 %v1188, -0.5
        %v1317 = vmul.f32 %v1189, -0.5
        %v1318 = vmul.f32 %v1190, -0.5
        %v1319 = vmul.f32 %v1191, -0.5
        %v1320 = vmul.f32 %v1192, -0.5
        %v1321 = vmul.f32 %v1193, -0.5
        %v1322 = vmul.f32 %v1194, -0.5
        %v1323 = vmul.f32 %v1195, -0.5
        %v1324 = vmul.f32 %v1196, -0.5
        %v1325 = vmul.f32 %v1197, -0.5
        %v1326 = vmul.f32 %v1198, -0.5
        %v1327 = vmul.f32 %v1199, -0.5
        %v1328 = vmul.f32 %v1200, -0.5
        %v1329 = vmul.f32 %v1201, -0.5
        %v1330 = vmul.f32 %v1202, -0.5
        %v1331 = vmul.f32 %v1203, -0.5
        %v1332 = vmul.f32 %v1204, -0.5
        %v1333 = vmul.f32 %v1205, -0.5
        %v1334 = vmul.f32 %v1206, -0.5
        %v1335 = vmul.f32 %v1207, -0.5
        %v1336 = vmul.f32 %v1208, -0.5
        %v1337 = vmul.f32 %v1209, -0.5
        %v1338 = vmul.f32 %v1210, -0.5
        %v1339 = vmul.f32 %v1211, -0.5
        %v1340 = vmul.f32 %v1212, -0.5
        %v1341 = vmul.f32 %v1213, -0.5
        %v1342 = vmul.f32 %v1214, -0.5
        %v1343 = vmul.f32 %v1215, -0.5
        %v1344 = vmul.f32 %v1216, -0.5
        %v1345 = vmul.f32 %v1217, -0.5
        %v1346 = vmul.f32 %v1218, -0.5
        %v1347 = vmul.f32 %v1219, -0.5
        %v1348 = vmul.f32 %v1220, -0.5
        %v1349 = vmul.f32 %v1221, -0.5
        %v1350 = vmul.f32 %v1222, -0.5
        %v1351 = vmul.f32 %v1223, -0.5
        %v1352 = vmul.f32 %v1224, -0.5
        %v1353 = vmul.f32 %v1225, -0.5
        %v1354 = vmul.f32 %v1226, -0.5
        %v1355 = vmul.f32 %v1227, -0.5
        %v1356 = vmul.f32 %v1228, -0.5
        %v1357 = vmul.f32 %v1229, -0.5
        %v1358 = vmul.f32 %v1230, -0.5
        %v1359 = vmul.f32 %v1231, -0.5
        %v1360 = vmul.f32 %v1232, -0.5
        %v1361 = vmul.f32 %v1233, -0.5
        %v1362 = vmul.f32 %v1234, -0.5
        %v1363 = vmul.f32 %v1235, -0.5
        %v1364 = vmul.f32 %v1236, -0.5
        %v1365 = vmul.f32 %v1237, -0.5
        %v1366 = vmul.f32 %v1238, -0.5
        %v1367 = vmul.f32 %v1239, -0.5
        %v1368 = vmul.f32 %v1240, -0.5
        %v1369 = vmul.f32 %v1241, -0.5
        %v1370 = vmul.f32 %v1242, -0.5
        %v1371 = vmul.f32 %v1243, -0.5
        %v1372 = vmul.f32 %v1244, -0.5
        %v1373 = vmul.f32 %v1245, -0.5
        %v1374 = vmul.f32 %v1246, -0.5
        %v1375 = vmul.f32 %v1247, -0.5
        %v1376 = vmul.f32 %v1248, -0.5
        %v1377 = vmul.f32 %v1249, -0.5
        %v1378 = vmul.f32 %v1250, -0.5
        %v1379 = vmul.f32 %v1251, -0.5
        %v1380 = vmul.f32 %v1252, -0.5
        %v1381 = vmul.f32 %v1253, -0.5
        %v1382 = vmul.f32 %v1254, -0.5
        %v1383 = vmul.f32 %v1255, -0.5
        %v1384 = vmul.f32 %v1256, -0.5
        %v1385 = vmul.f32 %v1257, -0.5
        %v1386 = vmul.f32 %v1258, -0.5
        %v1387 = vmul.f32 %v1259, -0.5
        %v1388 = vmul.f32 %v1260, -0.5
        %v1389 = vmul.f32 %v1261, -0.5
        %v1390 = vmul.f32 %v1262, -0.5
        %v1391 = vmul.f32 %v1263, -0.5
        %v1392 = vmul.f32 %v1264, -0.5
        %v1393 = vmul.f32 %v1265, -0.5
        %v1394 = vmul.f32 %v1266, -0.5
        %v1395 = vmul.f32 %v1267, -0.5
        %v1396 = vmul.f32 %v1268, -0.5
        %v1397 = vmul.f32 %v1269, 1.442695
        %v1398 = vpow.pop %v1397
        %v1399 = vmul.f32 %v1270, 1.442695
        %v1400 = vpow.pop %v1399
        %v1401 = vmul.f32 %v1271, 1.442695
        %v1402 = vpow.pop %v1401
        %v1403 = vmul.f32 %v1272, 1.442695
        %v1404 = vpow.pop %v1403
        %v1405 = vmul.f32 %v1273, 1.442695
        %v1406 = vpow.pop %v1405
        %v1407 = vmul.f32 %v1274, 1.442695
        %v1408 = vpow.pop %v1407
        %v1409 = vmul.f32 %v1275, 1.442695
        %v1410 = vpow.pop %v1409
        %v1411 = vmul.f32 %v1276, 1.442695
        %v1412 = vpow.pop %v1411
        %v1413 = vmul.f32 %v1277, 1.442695
        %v1414 = vpow.pop %v1413
        %v1415 = vmul.f32 %v1278, 1.442695
        %v1416 = vpow.pop %v1415
        %v1417 = vmul.f32 %v1279, 1.442695
        %v1418 = vpow.pop %v1417
        %v1419 = vmul.f32 %v1280, 1.442695
        %v1420 = vpow.pop %v1419
        %v1421 = vmul.f32 %v1281, 1.442695
        %v1422 = vpow.pop %v1421
        %v1423 = vmul.f32 %v1282, 1.442695
        %v1424 = vpow.pop %v1423
        %v1425 = vmul.f32 %v1283, 1.442695
        %v1426 = vpow.pop %v1425
        %v1427 = vmul.f32 %v1284, 1.442695
        %v1428 = vpow.pop %v1427
        %v1429 = vmul.f32 %v1285, 1.442695
        %v1430 = vpow.pop %v1429
        %v1431 = vmul.f32 %v1286, 1.442695
        %v1432 = vpow.pop %v1431
        %v1433 = vmul.f32 %v1287, 1.442695
        %v1434 = vpow.pop %v1433
        %v1435 = vmul.f32 %v1288, 1.442695
        %v1436 = vpow.pop %v1435
        %v1437 = vmul.f32 %v1289, 1.442695
        %v1438 = vpow.pop %v1437
        %v1439 = vmul.f32 %v1290, 1.442695
        %v1440 = vpow.pop %v1439
        %v1441 = vmul.f32 %v1291, 1.442695
        %v1442 = vpow.pop %v1441
        %v1443 = vmul.f32 %v1292, 1.442695
        %v1444 = vpow.pop %v1443
        %v1445 = vmul.f32 %v1293, 1.442695
        %v1446 = vpow.pop %v1445
        %v1447 = vmul.f32 %v1294, 1.442695
        %v1448 = vpow.pop %v1447
        %v1449 = vmul.f32 %v1295, 1.442695
        %v1450 = vpow.pop %v1449
        %v1451 = vmul.f32 %v1296, 1.442695
        %v1452 = vpow.pop %v1451
        %v1453 = vmul.f32 %v1297, 1.442695
        %v1454 = vpow.pop %v1453
        %v1455 = vmul.f32 %v1298, 1.442695
        %v1456 = vpow.pop %v1455
        %v1457 = vmul.f32 %v1299, 1.442695
        %v1458 = vpow.pop %v1457
        %v1459 = vmul.f32 %v1300, 1.442695
        %v1460 = vpow.pop %v1459
        %v1461 = vmul.f32 %v1301, 1.442695
        %v1462 = vpow.pop %v1461
        %v1463 = vmul.f32 %v1302, 1.442695
        %v1464 = vpow.pop %v1463
        %v1465 = vmul.f32 %v1303, 1.442695
        %v1466 = vpow.pop %v1465
        %v1467 = vmul.f32 %v1304, 1.442695
        %v1468 = vpow.pop %v1467
        %v1469 = vmul.f32 %v1305, 1.442695
        %v1470 = vpow.pop %v1469
        %v1471 = vmul.f32 %v1306, 1.442695
        %v1472 = vpow.pop %v1471
        %v1473 = vmul.f32 %v1307, 1.442695
        %v1474 = vpow.pop %v1473
        %v1475 = vmul.f32 %v1308, 1.442695
        %v1476 = vpow.pop %v1475
        %v1477 = vmul.f32 %v1309, 1.442695
        %v1478 = vpow.pop %v1477
        %v1479 = vmul.f32 %v1310, 1.442695
        %v1480 = vpow.pop %v1479
        %v1481 = vmul.f32 %v1311, 1.442695
        %v1482 = vpow.pop %v1481
        %v1483 = vmul.f32 %v1312, 1.442695
        %v1484 = vpow.pop %v1483
        %v1485 = vmul.f32 %v1313, 1.442695
        %v1486 = vpow.pop %v1485
        %v1487 = vmul.f32 %v1314, 1.442695
        %v1488 = vpow.pop %v1487
        %v1489 = vmul.f32 %v1315, 1.442695
        %v1490 = vpow.pop %v1489
        %v1491 = vmul.f32 %v1316, 1.442695
        %v1492 = vpow.pop %v1491
        %v1493 = vmul.f32 %v1317, 1.442695
        %v1494 = vpow.pop %v1493
        %v1495 = vmul.f32 %v1318, 1.442695
        %v1496 = vpow.pop %v1495
        %v1497 = vmul.f32 %v1319, 1.442695
        %v1498 = vpow.pop %v1497
        %v1499 = vmul.f32 %v1320, 1.442695
        %v1500 = vpow.pop %v1499
        %v1501 = vmul.f32 %v1321, 1.442695
        %v1502 = vpow.pop %v1501
        %v1503 = vmul.f32 %v1322, 1.442695
        %v1504 = vpow.pop %v1503
        %v1505 = vmul.f32 %v1323, 1.442695
        %v1506 = vpow.pop %v1505
        %v1507 = vmul.f32 %v1324, 1.442695
        %v1508 = vpow.pop %v1507
        %v1509 = vmul.f32 %v1325, 1.442695
        %v1510 = vpow.pop %v1509
        %v1511 = vmul.f32 %v1326, 1.442695
        %v1512 = vpow.pop %v1511
        %v1513 = vmul.f32 %v1327, 1.442695
        %v1514 = vpow.pop %v1513
        %v1515 = vmul.f32 %v1328, 1.442695
        %v1516 = vpow.pop %v1515
        %v1517 = vmul.f32 %v1329, 1.442695
        %v1518 = vpow.pop %v1517
        %v1519 = vmul.f32 %v1330, 1.442695
        %v1520 = vpow.pop %v1519
        %v1521 = vmul.f32 %v1331, 1.442695
        %v1522 = vpow.pop %v1521
        %v1523 = vmul.f32 %v1332, 1.442695
        %v1524 = vpow.pop %v1523
        %v1525 = vmul.f32 %v1333, 1.442695
        %v1526 = vpow.pop %v1525
        %v1527 = vmul.f32 %v1334, 1.442695
        %v1528 = vpow.pop %v1527
        %v1529 = vmul.f32 %v1335, 1.442695
        %v1530 = vpow.pop %v1529
        %v1531 = vmul.f32 %v1336, 1.442695
        %v1532 = vpow.pop %v1531
        %v1533 = vmul.f32 %v1337, 1.442695
        %v1534 = vpow.pop %v1533
        %v1535 = vmul.f32 %v1338, 1.442695
        %v1536 = vpow.pop %v1535
        %v1537 = vmul.f32 %v1339, 1.442695
        %v1538 = vpow.pop %v1537
        %v1539 = vmul.f32 %v1340, 1.442695
        %v1540 = vpow.pop %v1539
        %v1541 = vmul.f32 %v1341, 1.442695
        %v1542 = vpow.pop %v1541
        %v1543 = vmul.f32 %v1342, 1.442695
        %v1544 = vpow.pop %v1543
        %v1545 = vmul.f32 %v1343, 1.442695
        %v1546 = vpow.pop %v1545
        %v1547 = vmul.f32 %v1344, 1.442695
        %v1548 = vpow.pop %v1547
        %v1549 = vmul.f32 %v1345, 1.442695
        %v1550 = vpow.pop %v1549
        %v1551 = vmul.f32 %v1346, 1.442695
        %v1552 = vpow.pop %v1551
        %v1553 = vmul.f32 %v1347, 1.442695
        %v1554 = vpow.pop %v1553
        %v1555 = vmul.f32 %v1348, 1.442695
        %v1556 = vpow.pop %v1555
        %v1557 = vmul.f32 %v1349, 1.442695
        %v1558 = vpow.pop %v1557
        %v1559 = vmul.f32 %v1350, 1.442695
        %v1560 = vpow.pop %v1559
        %v1561 = vmul.f32 %v1351, 1.442695
        %v1562 = vpow.pop %v1561
        %v1563 = vmul.f32 %v1352, 1.442695
        %v1564 = vpow.pop %v1563
        %v1565 = vmul.f32 %v1353, 1.442695
        %v1566 = vpow.pop %v1565
        %v1567 = vmul.f32 %v1354, 1.442695
        %v1568 = vpow.pop %v1567
        %v1569 = vmul.f32 %v1355, 1.442695
        %v1570 = vpow.pop %v1569
        %v1571 = vmul.f32 %v1356, 1.442695
        %v1572 = vpow.pop %v1571
        %v1573 = vmul.f32 %v1357, 1.442695
        %v1574 = vpow.pop %v1573
        %v1575 = vmul.f32 %v1358, 1.442695
        %v1576 = vpow.pop %v1575
        %v1577 = vmul.f32 %v1359, 1.442695
        %v1578 = vpow.pop %v1577
        %v1579 = vmul.f32 %v1360, 1.442695
        %v1580 = vpow.pop %v1579
        %v1581 = vmul.f32 %v1361, 1.442695
        %v1582 = vpow.pop %v1581
        %v1583 = vmul.f32 %v1362, 1.442695
        %v1584 = vpow.pop %v1583
        %v1585 = vmul.f32 %v1363, 1.442695
        %v1586 = vpow.pop %v1585
        %v1587 = vmul.f32 %v1364, 1.442695
        %v1588 = vpow.pop %v1587
        %v1589 = vmul.f32 %v1365, 1.442695
        %v1590 = vpow.pop %v1589
        %v1591 = vmul.f32 %v1366, 1.442695
        %v1592 = vpow.pop %v1591
        %v1593 = vmul.f32 %v1367, 1.442695
        %v1594 = vpow.pop %v1593
        %v1595 = vmul.f32 %v1368, 1.442695
        %v1596 = vpow.pop %v1595
        %v1597 = vmul.f32 %v1369, 1.442695
        %v1598 = vpow.pop %v1597
        %v1599 = vmul.f32 %v1370, 1.442695
        %v1600 = vpow.pop %v1599
        %v1601 = vmul.f32 %v1371, 1.442695
        %v1602 = vpow.pop %v1601
        %v1603 = vmul.f32 %v1372, 1.442695
        %v1604 = vpow.pop %v1603
        %v1605 = vmul.f32 %v1373, 1.442695
        %v1606 = vpow.pop %v1605
        %v1607 = vmul.f32 %v1374, 1.442695
        %v1608 = vpow.pop %v1607
        %v1609 = vmul.f32 %v1375, 1.442695
        %v1610 = vpow.pop %v1609
        %v1611 = vmul.f32 %v1376, 1.442695
        %v1612 = vpow.pop %v1611
        %v1613 = vmul.f32 %v1377, 1.442695
        %v1614 = vpow.pop %v1613
        %v1615 = vmul.f32 %v1378, 1.442695
        %v1616 = vpow.pop %v1615
        %v1617 = vmul.f32 %v1379, 1.442695
        %v1618 = vpow.pop %v1617
        %v1619 = vmul.f32 %v1380, 1.442695
        %v1620 = vpow.pop %v1619
        %v1621 = vmul.f32 %v1381, 1.442695
        %v1622 = vpow.pop %v1621
        %v1623 = vmul.f32 %v1382, 1.442695
        %v1624 = vpow.pop %v1623
        %v1625 = vmul.f32 %v1383, 1.442695
        %v1626 = vpow.pop %v1625
        %v1627 = vmul.f32 %v1384, 1.442695
        %v1628 = vpow.pop %v1627
        %v1629 = vmul.f32 %v1385, 1.442695
        %v1630 = vpow.pop %v1629
        %v1631 = vmul.f32 %v1386, 1.442695
        %v1632 = vpow.pop %v1631
        %v1633 = vmul.f32 %v1387, 1.442695
        %v1634 = vpow.pop %v1633
        %v1635 = vmul.f32 %v1388, 1.442695
        %v1636 = vpow.pop %v1635
        %v1637 = vmul.f32 %v1389, 1.442695
        %v1638 = vpow.pop %v1637
        %v1639 = vmul.f32 %v1390, 1.442695
        %v1640 = vpow.pop %v1639
        %v1641 = vmul.f32 %v1391, 1.442695
        %v1642 = vpow.pop %v1641
        %v1643 = vmul.f32 %v1392, 1.442695
        %v1644 = vpow.pop %v1643
        %v1645 = vmul.f32 %v1393, 1.442695
        %v1646 = vpow.pop %v1645
        %v1647 = vmul.f32 %v1394, 1.442695
        %v1648 = vpow.pop %v1647
        %v1649 = vmul.f32 %v1395, 1.442695
        %v1650 = vpow.pop %v1649
        %v1651 = vmul.f32 %v1396, 1.442695
        %v1652 = vpow.pop %v1651
        %1653 = vst [vmem:[%s221] sm:$0xff] %v1398
        %1654 = vst [vmem:[%s221 + $0x8] sm:$0xff] %v1400
        %1655 = vst [vmem:[%s221 + $0x10] sm:$0xff] %v1402
        %1656 = vst [vmem:[%s221 + $0x18] sm:$0xff] %v1404
        %1657 = vst [vmem:[%s221 + $0x20] sm:$0xff] %v1406
        %1658 = vst [vmem:[%s221 + $0x28] sm:$0xff] %v1408
        %1659 = vst [vmem:[%s221 + $0x30] sm:$0xff] %v1410
        %1660 = vst [vmem:[%s221 + $0x38] sm:$0xff] %v1412
        %1661 = vst [vmem:[%s221 + $0x40] sm:$0xff] %v1414
        %1662 = vst [vmem:[%s221 + $0x48] sm:$0xff] %v1416
        %1663 = vst [vmem:[%s221 + $0x50] sm:$0xff] %v1418
        %1664 = vst [vmem:[%s221 + $0x58] sm:$0xff] %v1420
        %1665 = vst [vmem:[%s221 + $0x60] sm:$0xff] %v1422
        %1666 = vst [vmem:[%s221 + $0x68] sm:$0xff] %v1424
        %1667 = vst [vmem:[%s221 + $0x70] sm:$0xff] %v1426
        %1668 = vst [vmem:[%s221 + $0x78] sm:$0xff] %v1428
        %1669 = vst [vmem:[%s221 + $0x80] sm:$0xff] %v1430
        %1670 = vst [vmem:[%s221 + $0x88] sm:$0xff] %v1432
        %1671 = vst [vmem:[%s221 + $0x90] sm:$0xff] %v1434
        %1672 = vst [vmem:[%s221 + $0x98] sm:$0xff] %v1436
        %1673 = vst [vmem:[%s221 + $0xa0] sm:$0xff] %v1438
        %1674 = vst [vmem:[%s221 + $0xa8] sm:$0xff] %v1440
        %1675 = vst [vmem:[%s221 + $0xb0] sm:$0xff] %v1442
        %1676 = vst [vmem:[%s221 + $0xb8] sm:$0xff] %v1444
        %1677 = vst [vmem:[%s221 + $0xc0] sm:$0xff] %v1446
        %1678 = vst [vmem:[%s221 + $0xc8] sm:$0xff] %v1448
        %1679 = vst [vmem:[%s221 + $0xd0] sm:$0xff] %v1450
        %1680 = vst [vmem:[%s221 + $0xd8] sm:$0xff] %v1452
        %1681 = vst [vmem:[%s221 + $0xe0] sm:$0xff] %v1454
        %1682 = vst [vmem:[%s221 + $0xe8] sm:$0xff] %v1456
        %1683 = vst [vmem:[%s221 + $0xf0] sm:$0xff] %v1458
        %1684 = vst [vmem:[%s221 + $0xf8] sm:$0xff] %v1460
        %1685 = vst [vmem:[%s221 + $0x100] sm:$0xff] %v1462
        %1686 = vst [vmem:[%s221 + $0x108] sm:$0xff] %v1464
        %1687 = vst [vmem:[%s221 + $0x110] sm:$0xff] %v1466
        %1688 = vst [vmem:[%s221 + $0x118] sm:$0xff] %v1468
        %1689 = vst [vmem:[%s221 + $0x120] sm:$0xff] %v1470
        %1690 = vst [vmem:[%s221 + $0x128] sm:$0xff] %v1472
        %1691 = vst [vmem:[%s221 + $0x130] sm:$0xff] %v1474
        %1692 = vst [vmem:[%s221 + $0x138] sm:$0xff] %v1476
        %1693 = vst [vmem:[%s221 + $0x140] sm:$0xff] %v1478
        %1694 = vst [vmem:[%s221 + $0x148] sm:$0xff] %v1480
        %1695 = vst [vmem:[%s221 + $0x150] sm:$0xff] %v1482
        %1696 = vst [vmem:[%s221 + $0x158] sm:$0xff] %v1484
        %1697 = vst [vmem:[%s221 + $0x160] sm:$0xff] %v1486
        %1698 = vst [vmem:[%s221 + $0x168] sm:$0xff] %v1488
        %1699 = vst [vmem:[%s221 + $0x170] sm:$0xff] %v1490
        %1700 = vst [vmem:[%s221 + $0x178] sm:$0xff] %v1492
        %1701 = vst [vmem:[%s221 + $0x180] sm:$0xff] %v1494
        %1702 = vst [vmem:[%s221 + $0x188] sm:$0xff] %v1496
        %1703 = vst [vmem:[%s221 + $0x190] sm:$0xff] %v1498
        %1704 = vst [vmem:[%s221 + $0x198] sm:$0xff] %v1500
        %1705 = vst [vmem:[%s221 + $0x1a0] sm:$0xff] %v1502
        %1706 = vst [vmem:[%s221 + $0x1a8] sm:$0xff] %v1504
        %1707 = vst [vmem:[%s221 + $0x1b0] sm:$0xff] %v1506
        %1708 = vst [vmem:[%s221 + $0x1b8] sm:$0xff] %v1508
        %1709 = vst [vmem:[%s221 + $0x1c0] sm:$0xff] %v1510
        %1710 = vst [vmem:[%s221 + $0x1c8] sm:$0xff] %v1512
        %1711 = vst [vmem:[%s221 + $0x1d0] sm:$0xff] %v1514
        %1712 = vst [vmem:[%s221 + $0x1d8] sm:$0xff] %v1516
        %1713 = vst [vmem:[%s221 + $0x1e0] sm:$0xff] %v1518
        %1714 = vst [vmem:[%s221 + $0x1e8] sm:$0xff] %v1520
        %1715 = vst [vmem:[%s221 + $0x1f0] sm:$0xff] %v1522
        %1716 = vst [vmem:[%s221 + $0x1f8] sm:$0xff] %v1524
        %1717 = vst [vmem:[%s221 + $0x200] sm:$0xff] %v1526
        %1718 = vst [vmem:[%s221 + $0x208] sm:$0xff] %v1528
        %1719 = vst [vmem:[%s221 + $0x210] sm:$0xff] %v1530
        %1720 = vst [vmem:[%s221 + $0x218] sm:$0xff] %v1532
        %1721 = vst [vmem:[%s221 + $0x220] sm:$0xff] %v1534
        %1722 = vst [vmem:[%s221 + $0x228] sm:$0xff] %v1536
        %1723 = vst [vmem:[%s221 + $0x230] sm:$0xff] %v1538
        %1724 = vst [vmem:[%s221 + $0x238] sm:$0xff] %v1540
        %1725 = vst [vmem:[%s221 + $0x240] sm:$0xff] %v1542
        %1726 = vst [vmem:[%s221 + $0x248] sm:$0xff] %v1544
        %1727 = vst [vmem:[%s221 + $0x250] sm:$0xff] %v1546
        %1728 = vst [vmem:[%s221 + $0x258] sm:$0xff] %v1548
        %1729 = vst [vmem:[%s221 + $0x260] sm:$0xff] %v1550
        %1730 = vst [vmem:[%s221 + $0x268] sm:$0xff] %v1552
        %1731 = vst [vmem:[%s221 + $0x270] sm:$0xff] %v1554
        %1732 = vst [vmem:[%s221 + $0x278] sm:$0xff] %v1556
        %1733 = vst [vmem:[%s221 + $0x280] sm:$0xff] %v1558
        %1734 = vst [vmem:[%s221 + $0x288] sm:$0xff] %v1560
        %1735 = vst [vmem:[%s221 + $0x290] sm:$0xff] %v1562
        %1736 = vst [vmem:[%s221 + $0x298] sm:$0xff] %v1564
        %1737 = vst [vmem:[%s221 + $0x2a0] sm:$0xff] %v1566
        %1738 = vst [vmem:[%s221 + $0x2a8] sm:$0xff] %v1568
        %1739 = vst [vmem:[%s221 + $0x2b0] sm:$0xff] %v1570
        %1740 = vst [vmem:[%s221 + $0x2b8] sm:$0xff] %v1572
        %1741 = vst [vmem:[%s221 + $0x2c0] sm:$0xff] %v1574
        %1742 = vst [vmem:[%s221 + $0x2c8] sm:$0xff] %v1576
        %1743 = vst [vmem:[%s221 + $0x2d0] sm:$0xff] %v1578
        %1744 = vst [vmem:[%s221 + $0x2d8] sm:$0xff] %v1580
        %1745 = vst [vmem:[%s221 + $0x2e0] sm:$0xff] %v1582
        %1746 = vst [vmem:[%s221 + $0x2e8] sm:$0xff] %v1584
        %1747 = vst [vmem:[%s221 + $0x2f0] sm:$0xff] %v1586
        %1748 = vst [vmem:[%s221 + $0x2f8] sm:$0xff] %v1588
        %1749 = vst [vmem:[%s221 + $0x300] sm:$0xff] %v1590
        %1750 = vst [vmem:[%s221 + $0x308] sm:$0xff] %v1592
        %1751 = vst [vmem:[%s221 + $0x310] sm:$0xff] %v1594
        %1752 = vst [vmem:[%s221 + $0x318] sm:$0xff] %v1596
        %1753 = vst [vmem:[%s221 + $0x320] sm:$0xff] %v1598
        %1754 = vst [vmem:[%s221 + $0x328] sm:$0xff] %v1600
        %1755 = vst [vmem:[%s221 + $0x330] sm:$0xff] %v1602
        %1756 = vst [vmem:[%s221 + $0x338] sm:$0xff] %v1604
        %1757 = vst [vmem:[%s221 + $0x340] sm:$0xff] %v1606
        %1758 = vst [vmem:[%s221 + $0x348] sm:$0xff] %v1608
        %1759 = vst [vmem:[%s221 + $0x350] sm:$0xff] %v1610
        %1760 = vst [vmem:[%s221 + $0x358] sm:$0xff] %v1612
        %1761 = vst [vmem:[%s221 + $0x360] sm:$0xff] %v1614
        %1762 = vst [vmem:[%s221 + $0x368] sm:$0xff] %v1616
        %1763 = vst [vmem:[%s221 + $0x370] sm:$0xff] %v1618
        %1764 = vst [vmem:[%s221 + $0x378] sm:$0xff] %v1620
        %1765 = vst [vmem:[%s221 + $0x380] sm:$0xff] %v1622
        %1766 = vst [vmem:[%s221 + $0x388] sm:$0xff] %v1624
        %1767 = vst [vmem:[%s221 + $0x390] sm:$0xff] %v1626
        %1768 = vst [vmem:[%s221 + $0x398] sm:$0xff] %v1628
        %1769 = vst [vmem:[%s221 + $0x3a0] sm:$0xff] %v1630
        %1770 = vst [vmem:[%s221 + $0x3a8] sm:$0xff] %v1632
        %1771 = vst [vmem:[%s221 + $0x3b0] sm:$0xff] %v1634
        %1772 = vst [vmem:[%s221 + $0x3b8] sm:$0xff] %v1636
        %1773 = vst [vmem:[%s221 + $0x3c0] sm:$0xff] %v1638
        %1774 = vst [vmem:[%s221 + $0x3c8] sm:$0xff] %v1640
        %1775 = vst [vmem:[%s221 + $0x3d0] sm:$0xff] %v1642
        %1776 = vst [vmem:[%s221 + $0x3d8] sm:$0xff] %v1644
        %1777 = vst [vmem:[%s221 + $0x3e0] sm:$0xff] %v1646
        %1778 = vst [vmem:[%s221 + $0x3e8] sm:$0xff] %v1648
        %1779 = vst [vmem:[%s221 + $0x3f0] sm:$0xff] %v1650
        %1780 = vst [vmem:[%s221 + $0x3f8] sm:$0xff] %v1652
        %s1781 = sand.u32 %s134, 1
        %s1782 = scalar_lea.sflag [#allocation3], %s1781
        %s1783 = sand.u32 %s134, 1
        %s1784 = smul.addr %s1783, 1024
        %s1785 = scalar_lea.vmem [#allocation2], %s1784
        // Predicated region
        $region37: #{tpu_custom_call.1} parent=35 // pred_check
          %p1786 = pneg %p144
        $region38: #{tpu_custom_call.1} parent=35 // pred_check_branch
          %1788 = sbr.rel (%p1786) target = $region40
        $region39: #{tpu_custom_call.1} parent=35 // pred_region
          %s1789 = smul.u32 32, %s22
          %s1790 = smul.u32 4, %s23
          %1792 = vsyncadd %s1782, 0
          %s1793 = smul.addr %s1789, 4
          %s1794 = sadd.s32 %s1790, %s1793
          %s1795 = smul.addr %s1794, 8
          %s1796 = scalar_lea.hbm %s4, %s1795
          %s1797 = sshll.u32 %s1785, 4
          %s1798 = int_to_ptr.vmem [resolvable:$true] %s1797
          %s1799 = sshll.u32 %s1796, 4
          %s1800 = int_to_ptr.hbm [resolvable:$true] %s1799
          %1805 = dma.vmem_to_hbm [thread:$0]  %s1798, 16384, %s1800, %s1782, 512, 512, 32
        $region40: #{tpu_custom_call.1} parent=35 // pred_fallthru
          _
      $region36: #{tpu_custom_call.1} parent=5 // pred_fallthru
        _
      %p1806 = scmp.le.s32.totalorder 2, %s13
      // Predicated region
      $region41: #{tpu_custom_call.1} parent=5 // pred_check
        %p1807 = pneg %p1806
      $region42: #{tpu_custom_call.1} parent=5 // pred_check_branch
        %1809 = sbr.rel (%p1807) target = $region44
      $region43: #{tpu_custom_call.1} parent=5 // pred_region
        %s1810 = ssub.s32 %s13, 2
        // Predicated region
        $region45: #{tpu_custom_call.1} parent=43 // pred_check
          %p1811 = pneg %p150
        $region46: #{tpu_custom_call.1} parent=43 // pred_check_branch
          %1813 = sbr.rel (%p1811) target = $region48
        $region47: #{tpu_custom_call.1} parent=43 // pred_region
          %s1814 = sand.u32 %s135, 1
          %s1815 = scalar_lea.sflag [#allocation3], %s1814
          %s1816 = sand.u32 %s135, 1
          %s1817 = smul.addr %s1816, 1024
          %s1818 = scalar_lea.vmem [#allocation2], %s1817
          %1820 = dma.done %s1815, 16384
        $region48: #{tpu_custom_call.1} parent=43 // pred_fallthru
          _
      $region44: #{tpu_custom_call.1} parent=5 // pred_fallthru
        _
    $region6: #{tpu_custom_call.1} parent=1 // loop_footer
      %s17 = sadd.s32 1, %s13
    $region7: #{tpu_custom_call.1} parent=1 // loop_footer_branch
      %12 = sbr.rel target = $region3
    $region8: #{tpu_custom_call.1} parent=1 // loop_exit
      _
    %1821 = vsyncpa [#allocation3], 1
    %s1822 = scalar_lea.sflag [#allocation3], 1
    %1823 = vsyncpa %s1822, 1

</llo_original>
